<compile_context>
chip_gen: v7x
topology: tpu7x:2x2x1
jax: 0.10.0
libtpu: 0.0.40
codegen_flags: <defaults>
</compile_context>

<pallas_src>
import jax
import jax.numpy as jnp
from jax import lax
from jax.experimental import pallas as pl
from jax.experimental.pallas import tpu as pltpu

LANE = 128
NEG_BIG = -1e30


def _round_up(x, m):
    return ((x + m - 1) // m) * m


# ------------------------------------------------------------------ kernel ---
def decoder_kernel(
    x_ref,       # (T*B, Hp)  embedded inputs, time-major, lane-padded
    h0_ref,      # (B, Hp)    initial hidden state, lane-padded (pad lanes = 0)
    wih_ref,     # (Hp, 3*Hp) fused input-to-hidden weights, blocks [r | z | n]
    whh_ref,     # (Hp, 3*Hp) fused hidden-to-hidden weights, blocks [r | z | n]
    bi_ref,      # (1, 3*Hp)  fused input bias (pad lanes = 0)
    bh_ref,      # (1, 3*Hp)  fused hidden bias (pad lanes = 0)
    wout_ref,    # (Hp, Vp)   output projection (pre-transposed, zero-padded)
    bout_ref,    # (1, Vp)    output bias (padded vocab lanes = -1e30)
    out_ref,     # (T*B, Vp)  log-softmax outputs, time-major, lane-dense
    hout_ref,    # (B, Hp)    final hidden state, lane-dense
):
    TB, Hp = x_ref.shape
    B = h0_ref.shape[0]
    T = TB // B
    Gp = whh_ref.shape[1]          # 3 * Hp
    GB = Gp // 3                   # per-gate block width == Hp (lane aligned)

    Wih = wih_ref[...]
    Whh = whh_ref[...]

    # ---- Hoisted input-side gates for ALL timesteps: one fused matmul -------
    gi_all = jnp.dot(x_ref[...], Wih,
                     preferred_element_type=jnp.float32) + bi_ref[...]   # (T*B, 3Hp)

    # Hoisted bias broadcast (the unrolled loop would otherwise emit T copies).
    bh_b = jnp.broadcast_to(bh_ref[...], (B, Gp))

    # ---- Serial GRU recurrence: ONE fused MXU op per step --------------------
    # Statically unrolled; padded lanes [H:Hp] of h stay exactly zero because
    # the padded weight/bias columns are zero and h0 padding is zero.
    # TODO(synk): keep Whh resident in MXU weight registers across the loop via
    # pltpu.matmul_push_rhs / matmul_acc_lhs / matmul_pop once shapes warrant.
    h = h0_ref[...]                                         # (B, Hp)
    hs = []
    for t in range(T):
        gi = gi_all[t * B:(t + 1) * B, :]                   # static time-major slice
        gh = jnp.dot(h, Whh, preferred_element_type=jnp.float32) + bh_b
        r = jax.nn.sigmoid(gi[:, 0:GB] + gh[:, 0:GB])
        z = jax.nn.sigmoid(gi[:, GB:2 * GB] + gh[:, GB:2 * GB])
        n = jnp.tanh(gi[:, 2 * GB:3 * GB] + r * gh[:, 2 * GB:3 * GB])
        h = (1.0 - z) * n + z * h                           # (B, Hp)
        hs.append(h)

    hout_ref[...] = h                                       # lane-dense store

    # ---- Hoisted projection + log_softmax, fed straight from vregs ----------
    hs_all = jnp.concatenate(hs, axis=0)                    # (T*B, Hp), time-major
    logits = jnp.dot(hs_all, wout_ref[...],
                     preferred_element_type=jnp.float32) + bout_ref[...]   # (T*B, Vp)
    m = jnp.max(logits, axis=-1, keepdims=True)
    lse = m + jnp.log(jnp.sum(jnp.exp(logits - m), axis=-1, keepdims=True))
    out_ref[...] = logits - lse                             # lane-dense unmasked store


# ------------------------------------------------- wrapper-side weight prep ---
def _fuse_pad_gate_weights(w, Hp):
    """PyTorch (3H, H) stacked [W_r; W_z; W_n] -> fused, lane-padded (Hp, 3*Hp)."""
    H = w.shape[1]
    blocks = []
    for g in range(3):
        blk = w[g * H:(g + 1) * H, :].T                      # (H, H)
        blocks.append(jnp.pad(blk, ((0, Hp - H), (0, Hp - H))))
    return jnp.concatenate(blocks, axis=1).astype(jnp.float32)   # (Hp, 3*Hp)


def _fuse_pad_gate_bias(b, Hp):
    H = b.shape[0] // 3
    blocks = [jnp.pad(b[g * H:(g + 1) * H], (0, Hp - H)) for g in range(3)]
    return jnp.concatenate(blocks)[None, :].astype(jnp.float32)  # (1, 3*Hp)


# ----------------------------------------------------------------- wrapper ---
@jax.jit
def decoder_forward(token_ids, hidden, params):
    """token_ids: (B, T) int32; hidden: (1, B, H) f32.

    Returns (log_probs (B, T, V), hidden (1, B, H)) matching the PyTorch module.
    """
    B, T = token_ids.shape
    V, H = params["embedding"].shape
    Hp = _round_up(H, LANE)
    Vp = _round_up(V, LANE)

    # Glue: embedding lookup (gather) stays in plain JAX.
    emb = jnp.take(params["embedding"], token_ids, axis=0).astype(jnp.float32)  # (B,T,H)

    # Wrapper-side layout plumbing: time-major flatten + lane padding.
    x_tm = jnp.transpose(emb, (1, 0, 2)).reshape(T * B, H)
    x_tm = jnp.pad(x_tm, ((0, 0), (0, Hp - H)))                                 # (T*B, Hp)
    h0 = jnp.pad(hidden[0].astype(jnp.float32), ((0, 0), (0, Hp - H)))          # (B, Hp)

    Wih = _fuse_pad_gate_weights(params["w_ih"].astype(jnp.float32), Hp)
    Whh = _fuse_pad_gate_weights(params["w_hh"].astype(jnp.float32), Hp)
    bi = _fuse_pad_gate_bias(params["b_ih"].astype(jnp.float32), Hp)
    bh = _fuse_pad_gate_bias(params["b_hh"].astype(jnp.float32), Hp)

    Wout = jnp.pad(params["w_out"].T.astype(jnp.float32),
                   ((0, Hp - H), (0, Vp - V)))                                  # (Hp, Vp)
    # Padded vocab columns get a huge negative bias so log_softmax ignores them.
    bout = jnp.pad(params["b_out"].astype(jnp.float32), (0, Vp - V),
                   constant_values=NEG_BIG)[None, :]                            # (1, Vp)

    flops = 2 * (2 * (T * B) * Hp * (3 * Hp)) + 2 * (T * B) * Hp * Vp
    transcendentals = 3 * T * B * Hp + (T * B) * (Vp + 1)
    bytes_accessed = 4 * (x_tm.size + h0.size + Wih.size + Whh.size + bi.size
                          + bh.size + Wout.size + bout.size
                          + (T * B) * Vp + B * Hp)

    vmem = pl.BlockSpec(memory_space=pltpu.MemorySpace.VMEM)

    out_p, h_p = pl.pallas_call(
        decoder_kernel,
        out_shape=(
            jax.ShapeDtypeStruct((T * B, Vp), jnp.float32),
            jax.ShapeDtypeStruct((B, Hp), jnp.float32),
        ),
        in_specs=[vmem] * 8,
        out_specs=(vmem, vmem),
        compiler_params=pltpu.CompilerParams(
            dimension_semantics=(),
            vmem_limit_bytes=32 * 1024 * 1024,
        ),
        cost_estimate=pl.CostEstimate(
            flops=int(flops),
            transcendentals=int(transcendentals),
            bytes_accessed=int(bytes_accessed),
        ),
    )(x_tm, h0, Wih, Whh, bi, bh, Wout, bout)

    # Wrapper-side unpad / reshape back to the PyTorch-facing layout.
    log_probs = out_p[:, :V].reshape(T, B, V).transpose(1, 0, 2)  # (B, T, V)
    h_final = h_p[:, :H]                                          # (B, H)
    return log_probs, h_final[None, :, :]


# -------------------------------------------------------------- param init ---
def init_params(key, output_size, hidden_size):
    """Deterministic synthetic parameters (PyTorch-like uniform init)."""
    ks = jax.random.split(key, 7)
    H, V = hidden_size, output_size
    bound = 1.0 / jnp.sqrt(H)
    u = lambda k, shape: jax.random.uniform(k, shape, jnp.float32, -bound, bound)
    return {
        "embedding": jax.random.normal(ks[0], (V, H), jnp.float32),
        "w_ih": u(ks[1], (3 * H, H)),
        "w_hh": u(ks[2], (3 * H, H)),
        "b_ih": u(ks[3], (3 * H,)),
        "b_hh": u(ks[4], (3 * H,)),
        "w_out": u(ks[5], (V, H)),
        "b_out": u(ks[6], (V,)),
    }


# ------------------------------------------------------ pure-JAX reference ---
def decoder_reference(token_ids, hidden, params):
    H = params["embedding"].shape[1]
    emb = jnp.take(params["embedding"], token_ids, axis=0)       # (B, T, H)
    h = hidden[0]
    w_ih, w_hh = params["w_ih"], params["w_hh"]
    b_ih, b_hh = params["b_ih"], params["b_hh"]

    def step(h, x_t):
        gi = x_t @ w_ih.T + b_ih
        gh = h @ w_hh.T + b_hh
        r = jax.nn.sigmoid(gi[:, :H] + gh[:, :H])
        z = jax.nn.sigmoid(gi[:, H:2 * H] + gh[:, H:2 * H])
        n = jnp.tanh(gi[:, 2 * H:] + r * gh[:, 2 * H:])
        h_new = (1.0 - z) * n + z * h
        return h_new, h_new

    h_final, hs = lax.scan(step, h, jnp.transpose(emb, (1, 0, 2)))
    hs = jnp.transpose(hs, (1, 0, 2))                            # (B, T, H)
    logits = hs @ params["w_out"].T + params["b_out"]
    log_probs = jax.nn.log_softmax(logits, axis=-1)
    return log_probs, h_final[None, :, :]


# -------------------------------------------------------------------- main ---
if __name__ == "__main__":
    B, T = 2, 8
    HIDDEN = 32
    OUTPUT = 16   # vocab / output_size

    key = jax.random.PRNGKey(0)
    k_tok, k_hid, k_par = jax.random.split(key, 3)

    params = init_params(k_par, OUTPUT, HIDDEN)
    token_ids = jax.random.randint(k_tok, (B, T), 0, OUTPUT, dtype=jnp.int32)
    hidden0 = jax.random.normal(k_hid, (1, B, HIDDEN), jnp.float32)

    log_probs, h_out = decoder_forward(token_ids, hidden0, params)
    jax.block_until_ready((log_probs, h_out))

    # Sanity check against a pure-JAX reference of the PyTorch forward.
    ref_lp, ref_h = decoder_reference(token_ids, hidden0, params)
    assert log_probs.shape == (B, T, OUTPUT)
    assert h_out.shape == (1, B, HIDDEN)
    assert jnp.allclose(log_probs, ref_lp, atol=1e-4, rtol=1e-4)
    assert jnp.allclose(h_out, ref_h, atol=1e-4, rtol=1e-4)

    print("KERNEL_OK")
</pallas_src>

<mosaic_0001>
module attributes {stable_mosaic.version = 11 : i64} {
  func.func @decoder_kernel(%arg0: memref<16x128xf32, #tpu.memory_space<vmem>>, %arg1: memref<2x128xf32, #tpu.memory_space<vmem>>, %arg2: memref<128x384xf32, #tpu.memory_space<vmem>>, %arg3: memref<128x384xf32, #tpu.memory_space<vmem>>, %arg4: memref<1x384xf32, #tpu.memory_space<vmem>>, %arg5: memref<1x384xf32, #tpu.memory_space<vmem>>, %arg6: memref<128x128xf32, #tpu.memory_space<vmem>>, %arg7: memref<1x128xf32, #tpu.memory_space<vmem>>, %arg8: memref<16x128xf32, #tpu.memory_space<vmem>>, %arg9: memref<2x128xf32, #tpu.memory_space<vmem>>) attributes {dimension_semantics = [], scalar_prefetch = 0 : i64, scratch_operands = 0 : i64, tpu.core_type = #tpu.core_type<tc>} {
    %c0 = arith.constant 0 : index
    %c0_0 = arith.constant 0 : index
    %0 = vector.load %arg2[%c0, %c0_0] : memref<128x384xf32, #tpu.memory_space<vmem>>, vector<128x384xf32>
    %c0_1 = arith.constant 0 : index
    %c0_2 = arith.constant 0 : index
    %1 = vector.load %arg3[%c0_1, %c0_2] : memref<128x384xf32, #tpu.memory_space<vmem>>, vector<128x384xf32>
    %c0_3 = arith.constant 0 : index
    %c0_4 = arith.constant 0 : index
    %2 = vector.load %arg0[%c0_3, %c0_4] : memref<16x128xf32, #tpu.memory_space<vmem>>, vector<16x128xf32>
    %cst = arith.constant dense<0.000000e+00> : vector<16x384xf32>
    %3 = tpu.matmul %2, %0, %cst {dimension_numbers = #tpu.dot_dimension_numbers<[1], [0], [0], [1], [0, 0, 1, 1], [], []>} : vector<16x128xf32>, vector<128x384xf32>, vector<16x384xf32> -> vector<16x384xf32>
    %c0_5 = arith.constant 0 : index
    %c0_6 = arith.constant 0 : index
    %4 = vector.load %arg4[%c0_5, %c0_6] : memref<1x384xf32, #tpu.memory_space<vmem>>, vector<1x384xf32>
    %5 = vector.broadcast %4 : vector<1x384xf32> to vector<16x384xf32>
    %6 = arith.addf %3, %5 : vector<16x384xf32>
    %c0_7 = arith.constant 0 : index
    %c0_8 = arith.constant 0 : index
    %7 = vector.load %arg5[%c0_7, %c0_8] : memref<1x384xf32, #tpu.memory_space<vmem>>, vector<1x384xf32>
    %8 = vector.shape_cast %7 : vector<1x384xf32> to vector<1x384xf32>
    %9 = vector.broadcast %8 : vector<1x384xf32> to vector<2x384xf32>
    %c0_9 = arith.constant 0 : index
    %c0_10 = arith.constant 0 : index
    %10 = vector.load %arg1[%c0_9, %c0_10] : memref<2x128xf32, #tpu.memory_space<vmem>>, vector<2x128xf32>
    %11 = vector.extract_strided_slice %6 {offsets = [0, 0], sizes = [2, 384], strides = [1, 1]} : vector<16x384xf32> to vector<2x384xf32>
    %cst_11 = arith.constant dense<0.000000e+00> : vector<2x384xf32>
    %12 = tpu.matmul %10, %1, %cst_11 {dimension_numbers = #tpu.dot_dimension_numbers<[1], [0], [0], [1], [0, 0, 1, 1], [], []>} : vector<2x128xf32>, vector<128x384xf32>, vector<2x384xf32> -> vector<2x384xf32>
    %13 = arith.addf %12, %9 : vector<2x384xf32>
    %14 = vector.extract_strided_slice %11 {offsets = [0, 0], sizes = [2, 128], strides = [1, 1]} : vector<2x384xf32> to vector<2x128xf32>
    %15 = vector.extract_strided_slice %13 {offsets = [0, 0], sizes = [2, 128], strides = [1, 1]} : vector<2x384xf32> to vector<2x128xf32>
    %16 = arith.addf %14, %15 : vector<2x128xf32>
    %17 = arith.negf %16 : vector<2x128xf32>
    %18 = math.exp %17 : vector<2x128xf32>
    %cst_12 = arith.constant 1.000000e+00 : f32
    %19 = vector.broadcast %cst_12 : f32 to vector<2x128xf32>
    %20 = arith.addf %19, %18 : vector<2x128xf32>
    %21 = arith.divf %19, %20 : vector<2x128xf32>
    %22 = vector.extract_strided_slice %11 {offsets = [0, 128], sizes = [2, 128], strides = [1, 1]} : vector<2x384xf32> to vector<2x128xf32>
    %23 = vector.extract_strided_slice %13 {offsets = [0, 128], sizes = [2, 128], strides = [1, 1]} : vector<2x384xf32> to vector<2x128xf32>
    %24 = arith.addf %22, %23 : vector<2x128xf32>
    %25 = arith.negf %24 : vector<2x128xf32>
    %26 = math.exp %25 : vector<2x128xf32>
    %cst_13 = arith.constant 1.000000e+00 : f32
    %27 = vector.broadcast %cst_13 : f32 to vector<2x128xf32>
    %28 = arith.addf %27, %26 : vector<2x128xf32>
    %29 = arith.divf %27, %28 : vector<2x128xf32>
    %30 = vector.extract_strided_slice %11 {offsets = [0, 256], sizes = [2, 128], strides = [1, 1]} : vector<2x384xf32> to vector<2x128xf32>
    %31 = vector.extract_strided_slice %13 {offsets = [0, 256], sizes = [2, 128], strides = [1, 1]} : vector<2x384xf32> to vector<2x128xf32>
    %32 = arith.mulf %21, %31 : vector<2x128xf32>
    %33 = arith.addf %30, %32 : vector<2x128xf32>
    %34 = math.tanh %33 : vector<2x128xf32>
    %cst_14 = arith.constant 1.000000e+00 : f32
    %35 = vector.broadcast %cst_14 : f32 to vector<2x128xf32>
    %36 = arith.subf %35, %29 : vector<2x128xf32>
    %37 = arith.mulf %36, %34 : vector<2x128xf32>
    %38 = arith.mulf %29, %10 : vector<2x128xf32>
    %39 = arith.addf %37, %38 : vector<2x128xf32>
    %40 = vector.extract_strided_slice %6 {offsets = [2, 0], sizes = [2, 384], strides = [1, 1]} : vector<16x384xf32> to vector<2x384xf32>
    %cst_15 = arith.constant dense<0.000000e+00> : vector<2x384xf32>
    %41 = tpu.matmul %39, %1, %cst_15 {dimension_numbers = #tpu.dot_dimension_numbers<[1], [0], [0], [1], [0, 0, 1, 1], [], []>} : vector<2x128xf32>, vector<128x384xf32>, vector<2x384xf32> -> vector<2x384xf32>
    %42 = arith.addf %41, %9 : vector<2x384xf32>
    %43 = vector.extract_strided_slice %40 {offsets = [0, 0], sizes = [2, 128], strides = [1, 1]} : vector<2x384xf32> to vector<2x128xf32>
    %44 = vector.extract_strided_slice %42 {offsets = [0, 0], sizes = [2, 128], strides = [1, 1]} : vector<2x384xf32> to vector<2x128xf32>
    %45 = arith.addf %43, %44 : vector<2x128xf32>
    %46 = arith.negf %45 : vector<2x128xf32>
    %47 = math.exp %46 : vector<2x128xf32>
    %cst_16 = arith.constant 1.000000e+00 : f32
    %48 = vector.broadcast %cst_16 : f32 to vector<2x128xf32>
    %49 = arith.addf %48, %47 : vector<2x128xf32>
    %50 = arith.divf %48, %49 : vector<2x128xf32>
    %51 = vector.extract_strided_slice %40 {offsets = [0, 128], sizes = [2, 128], strides = [1, 1]} : vector<2x384xf32> to vector<2x128xf32>
    %52 = vector.extract_strided_slice %42 {offsets = [0, 128], sizes = [2, 128], strides = [1, 1]} : vector<2x384xf32> to vector<2x128xf32>
    %53 = arith.addf %51, %52 : vector<2x128xf32>
    %54 = arith.negf %53 : vector<2x128xf32>
    %55 = math.exp %54 : vector<2x128xf32>
    %cst_17 = arith.constant 1.000000e+00 : f32
    %56 = vector.broadcast %cst_17 : f32 to vector<2x128xf32>
    %57 = arith.addf %56, %55 : vector<2x128xf32>
    %58 = arith.divf %56, %57 : vector<2x128xf32>
    %59 = vector.extract_strided_slice %40 {offsets = [0, 256], sizes = [2, 128], strides = [1, 1]} : vector<2x384xf32> to vector<2x128xf32>
    %60 = vector.extract_strided_slice %42 {offsets = [0, 256], sizes = [2, 128], strides = [1, 1]} : vector<2x384xf32> to vector<2x128xf32>
    %61 = arith.mulf %50, %60 : vector<2x128xf32>
    %62 = arith.addf %59, %61 : vector<2x128xf32>
    %63 = math.tanh %62 : vector<2x128xf32>
    %cst_18 = arith.constant 1.000000e+00 : f32
    %64 = vector.broadcast %cst_18 : f32 to vector<2x128xf32>
    %65 = arith.subf %64, %58 : vector<2x128xf32>
    %66 = arith.mulf %65, %63 : vector<2x128xf32>
    %67 = arith.mulf %58, %39 : vector<2x128xf32>
    %68 = arith.addf %66, %67 : vector<2x128xf32>
    %69 = vector.extract_strided_slice %6 {offsets = [4, 0], sizes = [2, 384], strides = [1, 1]} : vector<16x384xf32> to vector<2x384xf32>
    %cst_19 = arith.constant dense<0.000000e+00> : vector<2x384xf32>
    %70 = tpu.matmul %68, %1, %cst_19 {dimension_numbers = #tpu.dot_dimension_numbers<[1], [0], [0], [1], [0, 0, 1, 1], [], []>} : vector<2x128xf32>, vector<128x384xf32>, vector<2x384xf32> -> vector<2x384xf32>
    %71 = arith.addf %70, %9 : vector<2x384xf32>
    %72 = vector.extract_strided_slice %69 {offsets = [0, 0], sizes = [2, 128], strides = [1, 1]} : vector<2x384xf32> to vector<2x128xf32>
    %73 = vector.extract_strided_slice %71 {offsets = [0, 0], sizes = [2, 128], strides = [1, 1]} : vector<2x384xf32> to vector<2x128xf32>
    %74 = arith.addf %72, %73 : vector<2x128xf32>
    %75 = arith.negf %74 : vector<2x128xf32>
    %76 = math.exp %75 : vector<2x128xf32>
    %cst_20 = arith.constant 1.000000e+00 : f32
    %77 = vector.broadcast %cst_20 : f32 to vector<2x128xf32>
    %78 = arith.addf %77, %76 : vector<2x128xf32>
    %79 = arith.divf %77, %78 : vector<2x128xf32>
    %80 = vector.extract_strided_slice %69 {offsets = [0, 128], sizes = [2, 128], strides = [1, 1]} : vector<2x384xf32> to vector<2x128xf32>
    %81 = vector.extract_strided_slice %71 {offsets = [0, 128], sizes = [2, 128], strides = [1, 1]} : vector<2x384xf32> to vector<2x128xf32>
    %82 = arith.addf %80, %81 : vector<2x128xf32>
    %83 = arith.negf %82 : vector<2x128xf32>
    %84 = math.exp %83 : vector<2x128xf32>
    %cst_21 = arith.constant 1.000000e+00 : f32
    %85 = vector.broadcast %cst_21 : f32 to vector<2x128xf32>
    %86 = arith.addf %85, %84 : vector<2x128xf32>
    %87 = arith.divf %85, %86 : vector<2x128xf32>
    %88 = vector.extract_strided_slice %69 {offsets = [0, 256], sizes = [2, 128], strides = [1, 1]} : vector<2x384xf32> to vector<2x128xf32>
    %89 = vector.extract_strided_slice %71 {offsets = [0, 256], sizes = [2, 128], strides = [1, 1]} : vector<2x384xf32> to vector<2x128xf32>
    %90 = arith.mulf %79, %89 : vector<2x128xf32>
    %91 = arith.addf %88, %90 : vector<2x128xf32>
    %92 = math.tanh %91 : vector<2x128xf32>
    %cst_22 = arith.constant 1.000000e+00 : f32
    %93 = vector.broadcast %cst_22 : f32 to vector<2x128xf32>
    %94 = arith.subf %93, %87 : vector<2x128xf32>
    %95 = arith.mulf %94, %92 : vector<2x128xf32>
    %96 = arith.mulf %87, %68 : vector<2x128xf32>
    %97 = arith.addf %95, %96 : vector<2x128xf32>
    %98 = vector.extract_strided_slice %6 {offsets = [6, 0], sizes = [2, 384], strides = [1, 1]} : vector<16x384xf32> to vector<2x384xf32>
    %cst_23 = arith.constant dense<0.000000e+00> : vector<2x384xf32>
    %99 = tpu.matmul %97, %1, %cst_23 {dimension_numbers = #tpu.dot_dimension_numbers<[1], [0], [0], [1], [0, 0, 1, 1], [], []>} : vector<2x128xf32>, vector<128x384xf32>, vector<2x384xf32> -> vector<2x384xf32>
    %100 = arith.addf %99, %9 : vector<2x384xf32>
    %101 = vector.extract_strided_slice %98 {offsets = [0, 0], sizes = [2, 128], strides = [1, 1]} : vector<2x384xf32> to vector<2x128xf32>
    %102 = vector.extract_strided_slice %100 {offsets = [0, 0], sizes = [2, 128], strides = [1, 1]} : vector<2x384xf32> to vector<2x128xf32>
    %103 = arith.addf %101, %102 : vector<2x128xf32>
    %104 = arith.negf %103 : vector<2x128xf32>
    %105 = math.exp %104 : vector<2x128xf32>
    %cst_24 = arith.constant 1.000000e+00 : f32
    %106 = vector.broadcast %cst_24 : f32 to vector<2x128xf32>
    %107 = arith.addf %106, %105 : vector<2x128xf32>
    %108 = arith.divf %106, %107 : vector<2x128xf32>
    %109 = vector.extract_strided_slice %98 {offsets = [0, 128], sizes = [2, 128], strides = [1, 1]} : vector<2x384xf32> to vector<2x128xf32>
    %110 = vector.extract_strided_slice %100 {offsets = [0, 128], sizes = [2, 128], strides = [1, 1]} : vector<2x384xf32> to vector<2x128xf32>
    %111 = arith.addf %109, %110 : vector<2x128xf32>
    %112 = arith.negf %111 : vector<2x128xf32>
    %113 = math.exp %112 : vector<2x128xf32>
    %cst_25 = arith.constant 1.000000e+00 : f32
    %114 = vector.broadcast %cst_25 : f32 to vector<2x128xf32>
    %115 = arith.addf %114, %113 : vector<2x128xf32>
    %116 = arith.divf %114, %115 : vector<2x128xf32>
    %117 = vector.extract_strided_slice %98 {offsets = [0, 256], sizes = [2, 128], strides = [1, 1]} : vector<2x384xf32> to vector<2x128xf32>
    %118 = vector.extract_strided_slice %100 {offsets = [0, 256], sizes = [2, 128], strides = [1, 1]} : vector<2x384xf32> to vector<2x128xf32>
    %119 = arith.mulf %108, %118 : vector<2x128xf32>
    %120 = arith.addf %117, %119 : vector<2x128xf32>
    %121 = math.tanh %120 : vector<2x128xf32>
    %cst_26 = arith.constant 1.000000e+00 : f32
    %122 = vector.broadcast %cst_26 : f32 to vector<2x128xf32>
    %123 = arith.subf %122, %116 : vector<2x128xf32>
    %124 = arith.mulf %123, %121 : vector<2x128xf32>
    %125 = arith.mulf %116, %97 : vector<2x128xf32>
    %126 = arith.addf %124, %125 : vector<2x128xf32>
    %127 = vector.extract_strided_slice %6 {offsets = [8, 0], sizes = [2, 384], strides = [1, 1]} : vector<16x384xf32> to vector<2x384xf32>
    %cst_27 = arith.constant dense<0.000000e+00> : vector<2x384xf32>
    %128 = tpu.matmul %126, %1, %cst_27 {dimension_numbers = #tpu.dot_dimension_numbers<[1], [0], [0], [1], [0, 0, 1, 1], [], []>} : vector<2x128xf32>, vector<128x384xf32>, vector<2x384xf32> -> vector<2x384xf32>
    %129 = arith.addf %128, %9 : vector<2x384xf32>
    %130 = vector.extract_strided_slice %127 {offsets = [0, 0], sizes = [2, 128], strides = [1, 1]} : vector<2x384xf32> to vector<2x128xf32>
    %131 = vector.extract_strided_slice %129 {offsets = [0, 0], sizes = [2, 128], strides = [1, 1]} : vector<2x384xf32> to vector<2x128xf32>
    %132 = arith.addf %130, %131 : vector<2x128xf32>
    %133 = arith.negf %132 : vector<2x128xf32>
    %134 = math.exp %133 : vector<2x128xf32>
    %cst_28 = arith.constant 1.000000e+00 : f32
    %135 = vector.broadcast %cst_28 : f32 to vector<2x128xf32>
    %136 = arith.addf %135, %134 : vector<2x128xf32>
    %137 = arith.divf %135, %136 : vector<2x128xf32>
    %138 = vector.extract_strided_slice %127 {offsets = [0, 128], sizes = [2, 128], strides = [1, 1]} : vector<2x384xf32> to vector<2x128xf32>
    %139 = vector.extract_strided_slice %129 {offsets = [0, 128], sizes = [2, 128], strides = [1, 1]} : vector<2x384xf32> to vector<2x128xf32>
    %140 = arith.addf %138, %139 : vector<2x128xf32>
    %141 = arith.negf %140 : vector<2x128xf32>
    %142 = math.exp %141 : vector<2x128xf32>
    %cst_29 = arith.constant 1.000000e+00 : f32
    %143 = vector.broadcast %cst_29 : f32 to vector<2x128xf32>
    %144 = arith.addf %143, %142 : vector<2x128xf32>
    %145 = arith.divf %143, %144 : vector<2x128xf32>
    %146 = vector.extract_strided_slice %127 {offsets = [0, 256], sizes = [2, 128], strides = [1, 1]} : vector<2x384xf32> to vector<2x128xf32>
    %147 = vector.extract_strided_slice %129 {offsets = [0, 256], sizes = [2, 128], strides = [1, 1]} : vector<2x384xf32> to vector<2x128xf32>
    %148 = arith.mulf %137, %147 : vector<2x128xf32>
    %149 = arith.addf %146, %148 : vector<2x128xf32>
    %150 = math.tanh %149 : vector<2x128xf32>
    %cst_30 = arith.constant 1.000000e+00 : f32
    %151 = vector.broadcast %cst_30 : f32 to vector<2x128xf32>
    %152 = arith.subf %151, %145 : vector<2x128xf32>
    %153 = arith.mulf %152, %150 : vector<2x128xf32>
    %154 = arith.mulf %145, %126 : vector<2x128xf32>
    %155 = arith.addf %153, %154 : vector<2x128xf32>
    %156 = vector.extract_strided_slice %6 {offsets = [10, 0], sizes = [2, 384], strides = [1, 1]} : vector<16x384xf32> to vector<2x384xf32>
    %cst_31 = arith.constant dense<0.000000e+00> : vector<2x384xf32>
    %157 = tpu.matmul %155, %1, %cst_31 {dimension_numbers = #tpu.dot_dimension_numbers<[1], [0], [0], [1], [0, 0, 1, 1], [], []>} : vector<2x128xf32>, vector<128x384xf32>, vector<2x384xf32> -> vector<2x384xf32>
    %158 = arith.addf %157, %9 : vector<2x384xf32>
    %159 = vector.extract_strided_slice %156 {offsets = [0, 0], sizes = [2, 128], strides = [1, 1]} : vector<2x384xf32> to vector<2x128xf32>
    %160 = vector.extract_strided_slice %158 {offsets = [0, 0], sizes = [2, 128], strides = [1, 1]} : vector<2x384xf32> to vector<2x128xf32>
    %161 = arith.addf %159, %160 : vector<2x128xf32>
    %162 = arith.negf %161 : vector<2x128xf32>
    %163 = math.exp %162 : vector<2x128xf32>
    %cst_32 = arith.constant 1.000000e+00 : f32
    %164 = vector.broadcast %cst_32 : f32 to vector<2x128xf32>
    %165 = arith.addf %164, %163 : vector<2x128xf32>
    %166 = arith.divf %164, %165 : vector<2x128xf32>
    %167 = vector.extract_strided_slice %156 {offsets = [0, 128], sizes = [2, 128], strides = [1, 1]} : vector<2x384xf32> to vector<2x128xf32>
    %168 = vector.extract_strided_slice %158 {offsets = [0, 128], sizes = [2, 128], strides = [1, 1]} : vector<2x384xf32> to vector<2x128xf32>
    %169 = arith.addf %167, %168 : vector<2x128xf32>
    %170 = arith.negf %169 : vector<2x128xf32>
    %171 = math.exp %170 : vector<2x128xf32>
    %cst_33 = arith.constant 1.000000e+00 : f32
    %172 = vector.broadcast %cst_33 : f32 to vector<2x128xf32>
    %173 = arith.addf %172, %171 : vector<2x128xf32>
    %174 = arith.divf %172, %173 : vector<2x128xf32>
    %175 = vector.extract_strided_slice %156 {offsets = [0, 256], sizes = [2, 128], strides = [1, 1]} : vector<2x384xf32> to vector<2x128xf32>
    %176 = vector.extract_strided_slice %158 {offsets = [0, 256], sizes = [2, 128], strides = [1, 1]} : vector<2x384xf32> to vector<2x128xf32>
    %177 = arith.mulf %166, %176 : vector<2x128xf32>
    %178 = arith.addf %175, %177 : vector<2x128xf32>
    %179 = math.tanh %178 : vector<2x128xf32>
    %cst_34 = arith.constant 1.000000e+00 : f32
    %180 = vector.broadcast %cst_34 : f32 to vector<2x128xf32>
    %181 = arith.subf %180, %174 : vector<2x128xf32>
    %182 = arith.mulf %181, %179 : vector<2x128xf32>
    %183 = arith.mulf %174, %155 : vector<2x128xf32>
    %184 = arith.addf %182, %183 : vector<2x128xf32>
    %185 = vector.extract_strided_slice %6 {offsets = [12, 0], sizes = [2, 384], strides = [1, 1]} : vector<16x384xf32> to vector<2x384xf32>
    %cst_35 = arith.constant dense<0.000000e+00> : vector<2x384xf32>
    %186 = tpu.matmul %184, %1, %cst_35 {dimension_numbers = #tpu.dot_dimension_numbers<[1], [0], [0], [1], [0, 0, 1, 1], [], []>} : vector<2x128xf32>, vector<128x384xf32>, vector<2x384xf32> -> vector<2x384xf32>
    %187 = arith.addf %186, %9 : vector<2x384xf32>
    %188 = vector.extract_strided_slice %185 {offsets = [0, 0], sizes = [2, 128], strides = [1, 1]} : vector<2x384xf32> to vector<2x128xf32>
    %189 = vector.extract_strided_slice %187 {offsets = [0, 0], sizes = [2, 128], strides = [1, 1]} : vector<2x384xf32> to vector<2x128xf32>
    %190 = arith.addf %188, %189 : vector<2x128xf32>
    %191 = arith.negf %190 : vector<2x128xf32>
    %192 = math.exp %191 : vector<2x128xf32>
    %cst_36 = arith.constant 1.000000e+00 : f32
    %193 = vector.broadcast %cst_36 : f32 to vector<2x128xf32>
    %194 = arith.addf %193, %192 : vector<2x128xf32>
    %195 = arith.divf %193, %194 : vector<2x128xf32>
    %196 = vector.extract_strided_slice %185 {offsets = [0, 128], sizes = [2, 128], strides = [1, 1]} : vector<2x384xf32> to vector<2x128xf32>
    %197 = vector.extract_strided_slice %187 {offsets = [0, 128], sizes = [2, 128], strides = [1, 1]} : vector<2x384xf32> to vector<2x128xf32>
    %198 = arith.addf %196, %197 : vector<2x128xf32>
    %199 = arith.negf %198 : vector<2x128xf32>
    %200 = math.exp %199 : vector<2x128xf32>
    %cst_37 = arith.constant 1.000000e+00 : f32
    %201 = vector.broadcast %cst_37 : f32 to vector<2x128xf32>
    %202 = arith.addf %201, %200 : vector<2x128xf32>
    %203 = arith.divf %201, %202 : vector<2x128xf32>
    %204 = vector.extract_strided_slice %185 {offsets = [0, 256], sizes = [2, 128], strides = [1, 1]} : vector<2x384xf32> to vector<2x128xf32>
    %205 = vector.extract_strided_slice %187 {offsets = [0, 256], sizes = [2, 128], strides = [1, 1]} : vector<2x384xf32> to vector<2x128xf32>
    %206 = arith.mulf %195, %205 : vector<2x128xf32>
    %207 = arith.addf %204, %206 : vector<2x128xf32>
    %208 = math.tanh %207 : vector<2x128xf32>
    %cst_38 = arith.constant 1.000000e+00 : f32
    %209 = vector.broadcast %cst_38 : f32 to vector<2x128xf32>
    %210 = arith.subf %209, %203 : vector<2x128xf32>
    %211 = arith.mulf %210, %208 : vector<2x128xf32>
    %212 = arith.mulf %203, %184 : vector<2x128xf32>
    %213 = arith.addf %211, %212 : vector<2x128xf32>
    %214 = vector.extract_strided_slice %6 {offsets = [14, 0], sizes = [2, 384], strides = [1, 1]} : vector<16x384xf32> to vector<2x384xf32>
    %cst_39 = arith.constant dense<0.000000e+00> : vector<2x384xf32>
    %215 = tpu.matmul %213, %1, %cst_39 {dimension_numbers = #tpu.dot_dimension_numbers<[1], [0], [0], [1], [0, 0, 1, 1], [], []>} : vector<2x128xf32>, vector<128x384xf32>, vector<2x384xf32> -> vector<2x384xf32>
    %216 = arith.addf %215, %9 : vector<2x384xf32>
    %217 = vector.extract_strided_slice %214 {offsets = [0, 0], sizes = [2, 128], strides = [1, 1]} : vector<2x384xf32> to vector<2x128xf32>
    %218 = vector.extract_strided_slice %216 {offsets = [0, 0], sizes = [2, 128], strides = [1, 1]} : vector<2x384xf32> to vector<2x128xf32>
    %219 = arith.addf %217, %218 : vector<2x128xf32>
    %220 = arith.negf %219 : vector<2x128xf32>
    %221 = math.exp %220 : vector<2x128xf32>
    %cst_40 = arith.constant 1.000000e+00 : f32
    %222 = vector.broadcast %cst_40 : f32 to vector<2x128xf32>
    %223 = arith.addf %222, %221 : vector<2x128xf32>
    %224 = arith.divf %222, %223 : vector<2x128xf32>
    %225 = vector.extract_strided_slice %214 {offsets = [0, 128], sizes = [2, 128], strides = [1, 1]} : vector<2x384xf32> to vector<2x128xf32>
    %226 = vector.extract_strided_slice %216 {offsets = [0, 128], sizes = [2, 128], strides = [1, 1]} : vector<2x384xf32> to vector<2x128xf32>
    %227 = arith.addf %225, %226 : vector<2x128xf32>
    %228 = arith.negf %227 : vector<2x128xf32>
    %229 = math.exp %228 : vector<2x128xf32>
    %cst_41 = arith.constant 1.000000e+00 : f32
    %230 = vector.broadcast %cst_41 : f32 to vector<2x128xf32>
    %231 = arith.addf %230, %229 : vector<2x128xf32>
    %232 = arith.divf %230, %231 : vector<2x128xf32>
    %233 = vector.extract_strided_slice %214 {offsets = [0, 256], sizes = [2, 128], strides = [1, 1]} : vector<2x384xf32> to vector<2x128xf32>
    %234 = vector.extract_strided_slice %216 {offsets = [0, 256], sizes = [2, 128], strides = [1, 1]} : vector<2x384xf32> to vector<2x128xf32>
    %235 = arith.mulf %224, %234 : vector<2x128xf32>
    %236 = arith.addf %233, %235 : vector<2x128xf32>
    %237 = math.tanh %236 : vector<2x128xf32>
    %cst_42 = arith.constant 1.000000e+00 : f32
    %238 = vector.broadcast %cst_42 : f32 to vector<2x128xf32>
    %239 = arith.subf %238, %232 : vector<2x128xf32>
    %240 = arith.mulf %239, %237 : vector<2x128xf32>
    %241 = arith.mulf %232, %213 : vector<2x128xf32>
    %242 = arith.addf %240, %241 : vector<2x128xf32>
    %c0_43 = arith.constant 0 : index
    %c0_44 = arith.constant 0 : index
    %243 = vector.load %arg9[%c0_43, %c0_44] : memref<2x128xf32, #tpu.memory_space<vmem>>, vector<2x128xf32>
    tpu.vector_store %arg9[%c0_43, %c0_44], %242 {strides = array<i32>} : memref<2x128xf32, #tpu.memory_space<vmem>>, vector<2x128xf32>,
    %244 = tpu.concatenate %39, %68, %97, %126, %155, %184, %213, %242 in 0 : vector<2x128xf32>, vector<2x128xf32>, vector<2x128xf32>, vector<2x128xf32>, vector<2x128xf32>, vector<2x128xf32>, vector<2x128xf32>, vector<2x128xf32> -> vector<16x128xf32>
    %c0_45 = arith.constant 0 : index
    %c0_46 = arith.constant 0 : index
    %245 = vector.load %arg6[%c0_45, %c0_46] : memref<128x128xf32, #tpu.memory_space<vmem>>, vector<128x128xf32>
    %cst_47 = arith.constant dense<0.000000e+00> : vector<16x128xf32>
    %246 = tpu.matmul %244, %245, %cst_47 {dimension_numbers = #tpu.dot_dimension_numbers<[1], [0], [0], [1], [0, 0, 1, 1], [], []>} : vector<16x128xf32>, vector<128x128xf32>, vector<16x128xf32> -> vector<16x128xf32>
    %c0_48 = arith.constant 0 : index
    %c0_49 = arith.constant 0 : index
    %247 = vector.load %arg7[%c0_48, %c0_49] : memref<1x128xf32, #tpu.memory_space<vmem>>, vector<1x128xf32>
    %248 = vector.broadcast %247 : vector<1x128xf32> to vector<16x128xf32>
    %249 = arith.addf %246, %248 : vector<16x128xf32>
    %cst_50 = arith.constant dense<0xFF800000> : vector<16xf32>
    %250 = vector.multi_reduction <maximumf>, %249, %cst_50 [1] : vector<16x128xf32> to vector<16xf32>
    %251 = vector.shape_cast %250 : vector<16xf32> to vector<16x1xf32>
    %252 = vector.broadcast %251 : vector<16x1xf32> to vector<16x128xf32>
    %253 = arith.subf %249, %252 : vector<16x128xf32>
    %254 = math.exp %253 : vector<16x128xf32>
    %cst_51 = arith.constant dense<0.000000e+00> : vector<16xf32>
    %255 = vector.multi_reduction <add>, %254, %cst_51 [1] : vector<16x128xf32> to vector<16xf32>
    %256 = vector.shape_cast %255 : vector<16xf32> to vector<16x1xf32>
    %257 = math.log %256 : vector<16x1xf32>
    %258 = arith.addf %251, %257 : vector<16x1xf32>
    %259 = vector.broadcast %258 : vector<16x1xf32> to vector<16x128xf32>
    %260 = arith.subf %249, %259 : vector<16x128xf32>
    %c0_52 = arith.constant 0 : index
    %c0_53 = arith.constant 0 : index
    %261 = vector.load %arg8[%c0_52, %c0_53] : memref<16x128xf32, #tpu.memory_space<vmem>>, vector<16x128xf32>
    tpu.vector_store %arg8[%c0_52, %c0_53], %260 {strides = array<i32>} : memref<16x128xf32, #tpu.memory_space<vmem>>, vector<16x128xf32>,
    return
  }
}

</mosaic_0001>

<llo_original>
// kernel: decoder_forward.1
$region0: #{decoder_forward.1}
  #allocation0 [shape = 'u32[]', space=smem, size = 0x4, offset = 0x4, fixed_abs, tag = 'smem constant byte address 0x4 - core index']
  #allocation1 [shape = 'u32[144,128]{1,0:T(1,128)}', space=vmem, size = 0x12000, scoped, tag = 'internal scratch']
  %s0 = inlined_call_operand.vmem [shape: f32[16,128], index: 0, kind: input, shape index: {}]
  %s1 = inlined_call_operand.vmem [shape: f32[2,128], index: 1, kind: input, shape index: {}]
  %s2 = inlined_call_operand.vmem [shape: f32[128,384], index: 2, kind: input, shape index: {}]
  %s3 = inlined_call_operand.vmem [shape: f32[128,384], index: 3, kind: input, shape index: {}]
  %s4 = inlined_call_operand.vmem [shape: f32[1,384], index: 4, kind: input, shape index: {}]
  %s5 = inlined_call_operand.vmem [shape: f32[1,384], index: 5, kind: input, shape index: {}]
  %s6 = inlined_call_operand.vmem [shape: f32[128,128], index: 6, kind: input, shape index: {}]
  %s7 = inlined_call_operand.vmem [shape: f32[1,128], index: 7, kind: input, shape index: {}]
  %s8 = inlined_call_operand.vmem [shape: f32[16,128], index: 8, kind: output, shape index: {0}]
  %s9 = inlined_call_operand.vmem [shape: f32[2,128], index: 9, kind: output, shape index: {1}]
  %10 = xla_tuple %s8, %s9
  %s11 = sld [smem:[#allocation0]]
  $region50: #{decoder_forward.1} parent=0
    _
  %s13 = ssub.s32 1, %s11
  %s14 = scalar_select 0, %s13, %s11
  // Predicated region
  $region2: #{decoder_forward.1} parent=0 // pred_check
    _
  $region3: #{decoder_forward.1} parent=0 // pred_check_branch
    %16 = sbr.rel (0) target = $region5
  $region4: #{decoder_forward.1} parent=0 // pred_region
    _
  $region5: #{decoder_forward.1} parent=0 // pred_fallthru
    _
  // Predicated region
  $region6: #{decoder_forward.1} parent=0 // pred_check
    _
  $region7: #{decoder_forward.1} parent=0 // pred_check_branch
    %18 = sbr.rel (0) target = $region9
  $region8: #{decoder_forward.1} parent=0 // pred_region
    _
  $region9: #{decoder_forward.1} parent=0 // pred_fallthru
    _
  // Predicated region
  $region10: #{decoder_forward.1} parent=0 // pred_check
    _
  $region11: #{decoder_forward.1} parent=0 // pred_check_branch
    %20 = sbr.rel (0) target = $region13
  $region12: #{decoder_forward.1} parent=0 // pred_region
    _
  $region13: #{decoder_forward.1} parent=0 // pred_fallthru
    _
  // Predicated region
  $region14: #{decoder_forward.1} parent=0 // pred_check
    _
  $region15: #{decoder_forward.1} parent=0 // pred_check_branch
    %22 = sbr.rel (0) target = $region17
  $region16: #{decoder_forward.1} parent=0 // pred_region
    _
  $region17: #{decoder_forward.1} parent=0 // pred_fallthru
    _
  // Predicated region
  $region18: #{decoder_forward.1} parent=0 // pred_check
    _
  $region19: #{decoder_forward.1} parent=0 // pred_check_branch
    %24 = sbr.rel (0) target = $region21
  $region20: #{decoder_forward.1} parent=0 // pred_region
    _
  $region21: #{decoder_forward.1} parent=0 // pred_fallthru
    _
  // Predicated region
  $region22: #{decoder_forward.1} parent=0 // pred_check
    _
  $region23: #{decoder_forward.1} parent=0 // pred_check_branch
    %26 = sbr.rel (0) target = $region25
  $region24: #{decoder_forward.1} parent=0 // pred_region
    _
  $region25: #{decoder_forward.1} parent=0 // pred_fallthru
    _
  // Predicated region
  $region26: #{decoder_forward.1} parent=0 // pred_check
    _
  $region27: #{decoder_forward.1} parent=0 // pred_check_branch
    %28 = sbr.rel (0) target = $region29
  $region28: #{decoder_forward.1} parent=0 // pred_region
    _
  $region29: #{decoder_forward.1} parent=0 // pred_fallthru
    _
  // Predicated region
  $region30: #{decoder_forward.1} parent=0 // pred_check
    _
  $region31: #{decoder_forward.1} parent=0 // pred_check_branch
    %30 = sbr.rel (0) target = $region33
  $region32: #{decoder_forward.1} parent=0 // pred_region
    _
  $region33: #{decoder_forward.1} parent=0 // pred_fallthru
    _
  %v31 = vld [vmem:[%s2] sm:$0xff]
  %v32 = vld [vmem:[%s2 + $0x8] sm:$0xff]
  %v33 = vld [vmem:[%s2 + $0x10] sm:$0xff]
  %v34 = vld [vmem:[%s2 + $0x18] sm:$0xff]
  %v35 = vld [vmem:[%s2 + $0x20] sm:$0xff]
  %v36 = vld [vmem:[%s2 + $0x28] sm:$0xff]
  %v37 = vld [vmem:[%s2 + $0x30] sm:$0xff]
  %v38 = vld [vmem:[%s2 + $0x38] sm:$0xff]
  %v39 = vld [vmem:[%s2 + $0x40] sm:$0xff]
  %v40 = vld [vmem:[%s2 + $0x48] sm:$0xff]
  %v41 = vld [vmem:[%s2 + $0x50] sm:$0xff]
  %v42 = vld [vmem:[%s2 + $0x58] sm:$0xff]
  %v43 = vld [vmem:[%s2 + $0x60] sm:$0xff]
  %v44 = vld [vmem:[%s2 + $0x68] sm:$0xff]
  %v45 = vld [vmem:[%s2 + $0x70] sm:$0xff]
  %v46 = vld [vmem:[%s2 + $0x78] sm:$0xff]
  %v47 = vld [vmem:[%s2 + $0x80] sm:$0xff]
  %v48 = vld [vmem:[%s2 + $0x88] sm:$0xff]
  %v49 = vld [vmem:[%s2 + $0x90] sm:$0xff]
  %v50 = vld [vmem:[%s2 + $0x98] sm:$0xff]
  %v51 = vld [vmem:[%s2 + $0xa0] sm:$0xff]
  %v52 = vld [vmem:[%s2 + $0xa8] sm:$0xff]
  %v53 = vld [vmem:[%s2 + $0xb0] sm:$0xff]
  %v54 = vld [vmem:[%s2 + $0xb8] sm:$0xff]
  %v55 = vld [vmem:[%s2 + $0xc0] sm:$0xff]
  %v56 = vld [vmem:[%s2 + $0xc8] sm:$0xff]
  %v57 = vld [vmem:[%s2 + $0xd0] sm:$0xff]
  %v58 = vld [vmem:[%s2 + $0xd8] sm:$0xff]
  %v59 = vld [vmem:[%s2 + $0xe0] sm:$0xff]
  %v60 = vld [vmem:[%s2 + $0xe8] sm:$0xff]
  %v61 = vld [vmem:[%s2 + $0xf0] sm:$0xff]
  %v62 = vld [vmem:[%s2 + $0xf8] sm:$0xff]
  %v63 = vld [vmem:[%s2 + $0x100] sm:$0xff]
  %v64 = vld [vmem:[%s2 + $0x108] sm:$0xff]
  %v65 = vld [vmem:[%s2 + $0x110] sm:$0xff]
  %v66 = vld [vmem:[%s2 + $0x118] sm:$0xff]
  %v67 = vld [vmem:[%s2 + $0x120] sm:$0xff]
  %v68 = vld [vmem:[%s2 + $0x128] sm:$0xff]
  %v69 = vld [vmem:[%s2 + $0x130] sm:$0xff]
  %v70 = vld [vmem:[%s2 + $0x138] sm:$0xff]
  %v71 = vld [vmem:[%s2 + $0x140] sm:$0xff]
  %v72 = vld [vmem:[%s2 + $0x148] sm:$0xff]
  %v73 = vld [vmem:[%s2 + $0x150] sm:$0xff]
  %v74 = vld [vmem:[%s2 + $0x158] sm:$0xff]
  %v75 = vld [vmem:[%s2 + $0x160] sm:$0xff]
  %v76 = vld [vmem:[%s2 + $0x168] sm:$0xff]
  %v77 = vld [vmem:[%s2 + $0x170] sm:$0xff]
  %v78 = vld [vmem:[%s2 + $0x178] sm:$0xff]
  %v79 = vld [vmem:[%s3] sm:$0xff]
  %v80 = vld [vmem:[%s3 + $0x8] sm:$0xff]
  %v81 = vld [vmem:[%s3 + $0x10] sm:$0xff]
  %v82 = vld [vmem:[%s3 + $0x18] sm:$0xff]
  %v83 = vld [vmem:[%s3 + $0x20] sm:$0xff]
  %v84 = vld [vmem:[%s3 + $0x28] sm:$0xff]
  %v85 = vld [vmem:[%s3 + $0x30] sm:$0xff]
  %v86 = vld [vmem:[%s3 + $0x38] sm:$0xff]
  %v87 = vld [vmem:[%s3 + $0x40] sm:$0xff]
  %v88 = vld [vmem:[%s3 + $0x48] sm:$0xff]
  %v89 = vld [vmem:[%s3 + $0x50] sm:$0xff]
  %v90 = vld [vmem:[%s3 + $0x58] sm:$0xff]
  %v91 = vld [vmem:[%s3 + $0x60] sm:$0xff]
  %v92 = vld [vmem:[%s3 + $0x68] sm:$0xff]
  %v93 = vld [vmem:[%s3 + $0x70] sm:$0xff]
  %v94 = vld [vmem:[%s3 + $0x78] sm:$0xff]
  %v95 = vld [vmem:[%s3 + $0x80] sm:$0xff]
  %v96 = vld [vmem:[%s3 + $0x88] sm:$0xff]
  %v97 = vld [vmem:[%s3 + $0x90] sm:$0xff]
  %v98 = vld [vmem:[%s3 + $0x98] sm:$0xff]
  %v99 = vld [vmem:[%s3 + $0xa0] sm:$0xff]
  %v100 = vld [vmem:[%s3 + $0xa8] sm:$0xff]
  %v101 = vld [vmem:[%s3 + $0xb0] sm:$0xff]
  %v102 = vld [vmem:[%s3 + $0xb8] sm:$0xff]
  %v103 = vld [vmem:[%s3 + $0xc0] sm:$0xff]
  %v104 = vld [vmem:[%s3 + $0xc8] sm:$0xff]
  %v105 = vld [vmem:[%s3 + $0xd0] sm:$0xff]
  %v106 = vld [vmem:[%s3 + $0xd8] sm:$0xff]
  %v107 = vld [vmem:[%s3 + $0xe0] sm:$0xff]
  %v108 = vld [vmem:[%s3 + $0xe8] sm:$0xff]
  %v109 = vld [vmem:[%s3 + $0xf0] sm:$0xff]
  %v110 = vld [vmem:[%s3 + $0xf8] sm:$0xff]
  %v111 = vld [vmem:[%s3 + $0x100] sm:$0xff]
  %v112 = vld [vmem:[%s3 + $0x108] sm:$0xff]
  %v113 = vld [vmem:[%s3 + $0x110] sm:$0xff]
  %v114 = vld [vmem:[%s3 + $0x118] sm:$0xff]
  %v115 = vld [vmem:[%s3 + $0x120] sm:$0xff]
  %v116 = vld [vmem:[%s3 + $0x128] sm:$0xff]
  %v117 = vld [vmem:[%s3 + $0x130] sm:$0xff]
  %v118 = vld [vmem:[%s3 + $0x138] sm:$0xff]
  %v119 = vld [vmem:[%s3 + $0x140] sm:$0xff]
  %v120 = vld [vmem:[%s3 + $0x148] sm:$0xff]
  %v121 = vld [vmem:[%s3 + $0x150] sm:$0xff]
  %v122 = vld [vmem:[%s3 + $0x158] sm:$0xff]
  %v123 = vld [vmem:[%s3 + $0x160] sm:$0xff]
  %v124 = vld [vmem:[%s3 + $0x168] sm:$0xff]
  %v125 = vld [vmem:[%s3 + $0x170] sm:$0xff]
  %v126 = vld [vmem:[%s3 + $0x178] sm:$0xff]
  %v127 = vld [vmem:[%s0] sm:$0xff]
  %v128 = vld [vmem:[%s0 + $0x8] sm:$0xff]
  %v129 = vld [vmem:[%s4] sm:$0x7]
  %v131 = vlaneseq
  %v132 = vshrl.u32 %v131, 7
  %v133 = vsub.s32 0, %v132
  %v134 = vrot.slane %v129, %v133
  %v135 = vlaneseq
  %v136 = vshrl.u32 %v135, 7
  %v137 = vsub.s32 1, %v136
  %v138 = vrot.slane %v129, %v137
  %v139 = vlaneseq
  %v140 = vshrl.u32 %v139, 7
  %v141 = vsub.s32 2, %v140
  %v142 = vrot.slane %v129, %v141
  %146 = vmatprep.subr.mxu0 %v32
  %147 = vmatpush1.msra.mxu0 %v31
  %148 = vmatprep.subr.mxu0 %v35
  %149 = vmatpush1.msra.mxu0 %v34
  %150 = vmatprep.subr.mxu0 %v38
  %151 = vmatpush1.msra.mxu0 %v37
  %152 = vmatprep.subr.mxu0 %v41
  %153 = vmatpush1.msra.mxu0 %v40
  %154 = vmatprep.subr.mxu0 %v44
  %155 = vmatpush1.msra.mxu0 %v43
  %156 = vmatprep.subr.mxu0 %v47
  %157 = vmatpush1.msra.mxu0 %v46
  %158 = vmatprep.subr.mxu0 %v50
  %159 = vmatpush1.msra.mxu0 %v49
  %160 = vmatprep.subr.mxu0 %v53
  %161 = vmatpush1.msra.mxu0 %v52
  %162 = vmatprep.subr.mxu0 %v56
  %163 = vmatpush1.msra.mxu0 %v55
  %164 = vmatprep.subr.mxu0 %v59
  %165 = vmatpush1.msra.mxu0 %v58
  %166 = vmatprep.subr.mxu0 %v62
  %167 = vmatpush1.msra.mxu0 %v61
  %168 = vmatprep.subr.mxu0 %v65
  %169 = vmatpush1.msra.mxu0 %v64
  %170 = vmatprep.subr.mxu0 %v68
  %171 = vmatpush1.msra.mxu0 %v67
  %172 = vmatprep.subr.mxu0 %v71
  %173 = vmatpush1.msra.mxu0 %v70
  %174 = vmatprep.subr.mxu0 %v74
  %175 = vmatpush1.msra.mxu0 %v73
  %176 = vmatprep.subr.mxu0 %v77
  %177 = vmatpush1.msra.mxu0 %v76
  %178 = vmatprep.subr.mxu0 0.0
  %179 = vmatpush1.msra.mxu0 0.0
  %180 = vmatprep.subr.mxu0 0.0
  %181 = vmatpush1.msra.mxu0 0.0
  %182 = vmatprep.subr.mxu0 0.0
  %183 = vmatpush1.msra.mxu0 0.0
  %184 = vmatprep.subr.mxu0 0.0
  %185 = vmatpush1.msra.mxu0 0.0
  %186 = vmatprep.subr.mxu0 0.0
  %187 = vmatpush1.msra.mxu0 0.0
  %188 = vmatprep.subr.mxu0 0.0
  %189 = vmatpush1.msra.mxu0 0.0
  %190 = vmatprep.subr.mxu0 0.0
  %191 = vmatpush1.msra.mxu0 0.0
  %192 = vmatprep.subr.mxu0 0.0
  %193 = vmatpush1.msra.mxu0 0.0
  %194 = vmatprep.subr.mxu0 0.0
  %195 = vmatpush1.msra.mxu0 0.0
  %196 = vmatprep.subr.mxu0 0.0
  %197 = vmatpush1.msra.mxu0 0.0
  %198 = vmatprep.subr.mxu0 0.0
  %199 = vmatpush1.msra.mxu0 0.0
  %200 = vmatprep.subr.mxu0 0.0
  %201 = vmatpush1.msra.mxu0 0.0
  %202 = vmatprep.subr.mxu0 0.0
  %203 = vmatpush1.msra.mxu0 0.0
  %204 = vmatprep.subr.mxu0 0.0
  %205 = vmatpush1.msra.mxu0 0.0
  %206 = vmatprep.subr.mxu0 0.0
  %207 = vmatpush1.msra.mxu0 0.0
  %208 = vmatprep.subr.mxu0 0.0
  %209 = vmatpush1.msra.mxu0 0.0
  %210 = vmatprep.mubr.f32.mxu0 0.0
  %211 = vmatmul.mubr.f32.gmra.mrb[0].mxu0 %v127
  %v212 = vpop.f32.mrb[0].mxu0
  %v213 = vadd.f32 %v134, %v212
  %v214 = vpop.f32.mrb[0].mxu0
  %v215 = vadd.f32 %v138, %v214
  %216 = vmatprep.mubr.f32.mxu0 0.0
  %217 = vmatmul.mubr.f32.gmra.mrb[0].mxu0 %v128
  %v218 = vpop.f32.mrb[0].mxu0
  %v219 = vadd.f32 %v134, %v218
  %v220 = vpop.f32.mrb[0].mxu0
  %v221 = vadd.f32 %v138, %v220
  %222 = vdwg.mxu0
  %223 = vmatprep.subr.mxu0 0.0
  %224 = vmatpush1.msra.mxu0 %v33
  %225 = vmatprep.subr.mxu0 0.0
  %226 = vmatpush1.msra.mxu0 %v36
  %227 = vmatprep.subr.mxu0 0.0
  %228 = vmatpush1.msra.mxu0 %v39
  %229 = vmatprep.subr.mxu0 0.0
  %230 = vmatpush1.msra.mxu0 %v42
  %231 = vmatprep.subr.mxu0 0.0
  %232 = vmatpush1.msra.mxu0 %v45
  %233 = vmatprep.subr.mxu0 0.0
  %234 = vmatpush1.msra.mxu0 %v48
  %235 = vmatprep.subr.mxu0 0.0
  %236 = vmatpush1.msra.mxu0 %v51
  %237 = vmatprep.subr.mxu0 0.0
  %238 = vmatpush1.msra.mxu0 %v54
  %239 = vmatprep.subr.mxu0 0.0
  %240 = vmatpush1.msra.mxu0 %v57
  %241 = vmatprep.subr.mxu0 0.0
  %242 = vmatpush1.msra.mxu0 %v60
  %243 = vmatprep.subr.mxu0 0.0
  %244 = vmatpush1.msra.mxu0 %v63
  %245 = vmatprep.subr.mxu0 0.0
  %246 = vmatpush1.msra.mxu0 %v66
  %247 = vmatprep.subr.mxu0 0.0
  %248 = vmatpush1.msra.mxu0 %v69
  %249 = vmatprep.subr.mxu0 0.0
  %250 = vmatpush1.msra.mxu0 %v72
  %251 = vmatprep.subr.mxu0 0.0
  %252 = vmatpush1.msra.mxu0 %v75
  %253 = vmatprep.subr.mxu0 0.0
  %254 = vmatpush1.msra.mxu0 %v78
  %255 = vmatprep.subr.mxu0 0.0
  %256 = vmatpush1.msra.mxu0 0.0
  %257 = vmatprep.subr.mxu0 0.0
  %258 = vmatpush1.msra.mxu0 0.0
  %259 = vmatprep.subr.mxu0 0.0
  %260 = vmatpush1.msra.mxu0 0.0
  %261 = vmatprep.subr.mxu0 0.0
  %262 = vmatpush1.msra.mxu0 0.0
  %263 = vmatprep.subr.mxu0 0.0
  %264 = vmatpush1.msra.mxu0 0.0
  %265 = vmatprep.subr.mxu0 0.0
  %266 = vmatpush1.msra.mxu0 0.0
  %267 = vmatprep.subr.mxu0 0.0
  %268 = vmatpush1.msra.mxu0 0.0
  %269 = vmatprep.subr.mxu0 0.0
  %270 = vmatpush1.msra.mxu0 0.0
  %271 = vmatprep.subr.mxu0 0.0
  %272 = vmatpush1.msra.mxu0 0.0
  %273 = vmatprep.subr.mxu0 0.0
  %274 = vmatpush1.msra.mxu0 0.0
  %275 = vmatprep.subr.mxu0 0.0
  %276 = vmatpush1.msra.mxu0 0.0
  %277 = vmatprep.subr.mxu0 0.0
  %278 = vmatpush1.msra.mxu0 0.0
  %279 = vmatprep.subr.mxu0 0.0
  %280 = vmatpush1.msra.mxu0 0.0
  %281 = vmatprep.subr.mxu0 0.0
  %282 = vmatpush1.msra.mxu0 0.0
  %283 = vmatprep.subr.mxu0 0.0
  %284 = vmatpush1.msra.mxu0 0.0
  %285 = vmatprep.subr.mxu0 0.0
  %286 = vmatpush1.msra.mxu0 0.0
  %287 = vmatprep.mubr.f32.mxu0 0.0
  %288 = vmatmul.mubr.f32.gmra.mrb[0].mxu0 %v127
  %v289 = vpop.f32.mrb[0].mxu0
  %v290 = vadd.f32 %v142, %v289
  %v291 = vpop.f32.mrb[0].mxu0
  %292 = vmatprep.mubr.f32.mxu0 0.0
  %293 = vmatmul.mubr.f32.gmra.mrb[0].mxu0 %v128
  %v294 = vpop.f32.mrb[0].mxu0
  %v295 = vadd.f32 %v142, %v294
  %v296 = vpop.f32.mrb[0].mxu0
  %297 = vdwg.mxu0
  %v298 = vld [vmem:[%s5] sm:$0x7]
  %v300 = vlaneseq
  %v301 = vshrl.u32 %v300, 7
  %v302 = vsub.s32 0, %v301
  %v303 = vrot.slane %v298, %v302
  %v304 = vlaneseq
  %v305 = vshrl.u32 %v304, 7
  %v306 = vsub.s32 1, %v305
  %v307 = vrot.slane %v298, %v306
  %v308 = vlaneseq
  %v309 = vshrl.u32 %v308, 7
  %v310 = vsub.s32 2, %v309
  %v311 = vrot.slane %v298, %v310
  %v315 = vld [vmem:[%s1] sm:$0x3]
  %316 = vmatprep.subr.mxu0 %v80
  %317 = vmatpush1.msra.mxu0 %v79
  %318 = vmatprep.subr.mxu0 %v83
  %319 = vmatpush1.msra.mxu0 %v82
  %320 = vmatprep.subr.mxu0 %v86
  %321 = vmatpush1.msra.mxu0 %v85
  %322 = vmatprep.subr.mxu0 %v89
  %323 = vmatpush1.msra.mxu0 %v88
  %324 = vmatprep.subr.mxu0 %v92
  %325 = vmatpush1.msra.mxu0 %v91
  %326 = vmatprep.subr.mxu0 %v95
  %327 = vmatpush1.msra.mxu0 %v94
  %328 = vmatprep.subr.mxu0 %v98
  %329 = vmatpush1.msra.mxu0 %v97
  %330 = vmatprep.subr.mxu0 %v101
  %331 = vmatpush1.msra.mxu0 %v100
  %332 = vmatprep.subr.mxu0 %v104
  %333 = vmatpush1.msra.mxu0 %v103
  %334 = vmatprep.subr.mxu0 %v107
  %335 = vmatpush1.msra.mxu0 %v106
  %336 = vmatprep.subr.mxu0 %v110
  %337 = vmatpush1.msra.mxu0 %v109
  %338 = vmatprep.subr.mxu0 %v113
  %339 = vmatpush1.msra.mxu0 %v112
  %340 = vmatprep.subr.mxu0 %v116
  %341 = vmatpush1.msra.mxu0 %v115
  %342 = vmatprep.subr.mxu0 %v119
  %343 = vmatpush1.msra.mxu0 %v118
  %344 = vmatprep.subr.mxu0 %v122
  %345 = vmatpush1.msra.mxu0 %v121
  %346 = vmatprep.subr.mxu0 %v125
  %347 = vmatpush1.msra.mxu0 %v124
  %348 = vmatprep.subr.mxu0 0.0
  %349 = vmatpush1.msra.mxu0 0.0
  %350 = vmatprep.subr.mxu0 0.0
  %351 = vmatpush1.msra.mxu0 0.0
  %352 = vmatprep.subr.mxu0 0.0
  %353 = vmatpush1.msra.mxu0 0.0
  %354 = vmatprep.subr.mxu0 0.0
  %355 = vmatpush1.msra.mxu0 0.0
  %356 = vmatprep.subr.mxu0 0.0
  %357 = vmatpush1.msra.mxu0 0.0
  %358 = vmatprep.subr.mxu0 0.0
  %359 = vmatpush1.msra.mxu0 0.0
  %360 = vmatprep.subr.mxu0 0.0
  %361 = vmatpush1.msra.mxu0 0.0
  %362 = vmatprep.subr.mxu0 0.0
  %363 = vmatpush1.msra.mxu0 0.0
  %364 = vmatprep.subr.mxu0 0.0
  %365 = vmatpush1.msra.mxu0 0.0
  %366 = vmatprep.subr.mxu0 0.0
  %367 = vmatpush1.msra.mxu0 0.0
  %368 = vmatprep.subr.mxu0 0.0
  %369 = vmatpush1.msra.mxu0 0.0
  %370 = vmatprep.subr.mxu0 0.0
  %371 = vmatpush1.msra.mxu0 0.0
  %372 = vmatprep.subr.mxu0 0.0
  %373 = vmatpush1.msra.mxu0 0.0
  %374 = vmatprep.subr.mxu0 0.0
  %375 = vmatpush1.msra.mxu0 0.0
  %376 = vmatprep.subr.mxu0 0.0
  %377 = vmatpush1.msra.mxu0 0.0
  %378 = vmatprep.subr.mxu0 0.0
  %379 = vmatpush1.msra.mxu0 0.0
  %380 = vmatprep.mubr.f32.mxu0 0.0
  %381 = vmatmul.mubr.f32.gmra.mrb[0].mxu0 %v315
  %v382 = vpop.f32.mrb[0].mxu0
  %v383 = vadd.f32 %v303, %v382
  %v384 = vpop.f32.mrb[0].mxu0
  %v385 = vadd.f32 %v307, %v384
  %386 = vdwg.mxu0
  %387 = vmatprep.subr.mxu0 0.0
  %388 = vmatpush1.msra.mxu0 %v81
  %389 = vmatprep.subr.mxu0 0.0
  %390 = vmatpush1.msra.mxu0 %v84
  %391 = vmatprep.subr.mxu0 0.0
  %392 = vmatpush1.msra.mxu0 %v87
  %393 = vmatprep.subr.mxu0 0.0
  %394 = vmatpush1.msra.mxu0 %v90
  %395 = vmatprep.subr.mxu0 0.0
  %396 = vmatpush1.msra.mxu0 %v93
  %397 = vmatprep.subr.mxu0 0.0
  %398 = vmatpush1.msra.mxu0 %v96
  %399 = vmatprep.subr.mxu0 0.0
  %400 = vmatpush1.msra.mxu0 %v99
  %401 = vmatprep.subr.mxu0 0.0
  %402 = vmatpush1.msra.mxu0 %v102
  %403 = vmatprep.subr.mxu0 0.0
  %404 = vmatpush1.msra.mxu0 %v105
  %405 = vmatprep.subr.mxu0 0.0
  %406 = vmatpush1.msra.mxu0 %v108
  %407 = vmatprep.subr.mxu0 0.0
  %408 = vmatpush1.msra.mxu0 %v111
  %409 = vmatprep.subr.mxu0 0.0
  %410 = vmatpush1.msra.mxu0 %v114
  %411 = vmatprep.subr.mxu0 0.0
  %412 = vmatpush1.msra.mxu0 %v117
  %413 = vmatprep.subr.mxu0 0.0
  %414 = vmatpush1.msra.mxu0 %v120
  %415 = vmatprep.subr.mxu0 0.0
  %416 = vmatpush1.msra.mxu0 %v123
  %417 = vmatprep.subr.mxu0 0.0
  %418 = vmatpush1.msra.mxu0 %v126
  %419 = vmatprep.subr.mxu0 0.0
  %420 = vmatpush1.msra.mxu0 0.0
  %421 = vmatprep.subr.mxu0 0.0
  %422 = vmatpush1.msra.mxu0 0.0
  %423 = vmatprep.subr.mxu0 0.0
  %424 = vmatpush1.msra.mxu0 0.0
  %425 = vmatprep.subr.mxu0 0.0
  %426 = vmatpush1.msra.mxu0 0.0
  %427 = vmatprep.subr.mxu0 0.0
  %428 = vmatpush1.msra.mxu0 0.0
  %429 = vmatprep.subr.mxu0 0.0
  %430 = vmatpush1.msra.mxu0 0.0
  %431 = vmatprep.subr.mxu0 0.0
  %432 = vmatpush1.msra.mxu0 0.0
  %433 = vmatprep.subr.mxu0 0.0
  %434 = vmatpush1.msra.mxu0 0.0
  %435 = vmatprep.subr.mxu0 0.0
  %436 = vmatpush1.msra.mxu0 0.0
  %437 = vmatprep.subr.mxu0 0.0
  %438 = vmatpush1.msra.mxu0 0.0
  %439 = vmatprep.subr.mxu0 0.0
  %440 = vmatpush1.msra.mxu0 0.0
  %441 = vmatprep.subr.mxu0 0.0
  %442 = vmatpush1.msra.mxu0 0.0
  %443 = vmatprep.subr.mxu0 0.0
  %444 = vmatpush1.msra.mxu0 0.0
  %445 = vmatprep.subr.mxu0 0.0
  %446 = vmatpush1.msra.mxu0 0.0
  %447 = vmatprep.subr.mxu0 0.0
  %448 = vmatpush1.msra.mxu0 0.0
  %449 = vmatprep.subr.mxu0 0.0
  %450 = vmatpush1.msra.mxu0 0.0
  %451 = vmatprep.mubr.f32.mxu0 0.0
  %452 = vmatmul.mubr.f32.gmra.mrb[0].mxu0 %v315
  %v453 = vpop.f32.mrb[0].mxu0
  %v454 = vadd.f32 %v311, %v453
  %v455 = vpop.f32.mrb[0].mxu0
  %456 = vdwg.mxu0
  %v457 = vadd.f32 %v213, %v383
  %v458 = vxor.u32 %v457, 2147483648
  %v459 = vmul.f32 %v458, 1.442695
  %v460 = vpow.pop %v459
  %v461 = vadd.f32 %v460, 1.0
  %v462 = vrcp.pop %v461
  %v463 = vmul.f32 1.0, %v462
  %v464 = vadd.f32 %v215, %v385
  %v465 = vxor.u32 %v464, 2147483648
  %v466 = vmul.f32 %v465, 1.442695
  %v467 = vpow.pop %v466
  %v468 = vadd.f32 %v467, 1.0
  %v469 = vrcp.pop %v468
  %v470 = vmul.f32 1.0, %v469
  %v471 = vmul.f32 %v463, %v454
  %v472 = vadd.f32 %v290, %v471
  %v473 = vtanh.pop %v472
  %v474 = vsub.f32 1.0, %v470
  %v475 = vmul.f32 %v474, %v473
  %v476 = vmul.f32 %v470, %v315
  %v477 = vadd.f32 %v475, %v476
  %478 = vmatprep.subr.mxu0 %v80
  %479 = vmatpush1.msra.mxu0 %v79
  %480 = vmatprep.subr.mxu0 %v83
  %481 = vmatpush1.msra.mxu0 %v82
  %482 = vmatprep.subr.mxu0 %v86
  %483 = vmatpush1.msra.mxu0 %v85
  %484 = vmatprep.subr.mxu0 %v89
  %485 = vmatpush1.msra.mxu0 %v88
  %486 = vmatprep.subr.mxu0 %v92
  %487 = vmatpush1.msra.mxu0 %v91
  %488 = vmatprep.subr.mxu0 %v95
  %489 = vmatpush1.msra.mxu0 %v94
  %490 = vmatprep.subr.mxu0 %v98
  %491 = vmatpush1.msra.mxu0 %v97
  %492 = vmatprep.subr.mxu0 %v101
  %493 = vmatpush1.msra.mxu0 %v100
  %494 = vmatprep.subr.mxu0 %v104
  %495 = vmatpush1.msra.mxu0 %v103
  %496 = vmatprep.subr.mxu0 %v107
  %497 = vmatpush1.msra.mxu0 %v106
  %498 = vmatprep.subr.mxu0 %v110
  %499 = vmatpush1.msra.mxu0 %v109
  %500 = vmatprep.subr.mxu0 %v113
  %501 = vmatpush1.msra.mxu0 %v112
  %502 = vmatprep.subr.mxu0 %v116
  %503 = vmatpush1.msra.mxu0 %v115
  %504 = vmatprep.subr.mxu0 %v119
  %505 = vmatpush1.msra.mxu0 %v118
  %506 = vmatprep.subr.mxu0 %v122
  %507 = vmatpush1.msra.mxu0 %v121
  %508 = vmatprep.subr.mxu0 %v125
  %509 = vmatpush1.msra.mxu0 %v124
  %510 = vmatprep.subr.mxu0 0.0
  %511 = vmatpush1.msra.mxu0 0.0
  %512 = vmatprep.subr.mxu0 0.0
  %513 = vmatpush1.msra.mxu0 0.0
  %514 = vmatprep.subr.mxu0 0.0
  %515 = vmatpush1.msra.mxu0 0.0
  %516 = vmatprep.subr.mxu0 0.0
  %517 = vmatpush1.msra.mxu0 0.0
  %518 = vmatprep.subr.mxu0 0.0
  %519 = vmatpush1.msra.mxu0 0.0
  %520 = vmatprep.subr.mxu0 0.0
  %521 = vmatpush1.msra.mxu0 0.0
  %522 = vmatprep.subr.mxu0 0.0
  %523 = vmatpush1.msra.mxu0 0.0
  %524 = vmatprep.subr.mxu0 0.0
  %525 = vmatpush1.msra.mxu0 0.0
  %526 = vmatprep.subr.mxu0 0.0
  %527 = vmatpush1.msra.mxu0 0.0
  %528 = vmatprep.subr.mxu0 0.0
  %529 = vmatpush1.msra.mxu0 0.0
  %530 = vmatprep.subr.mxu0 0.0
  %531 = vmatpush1.msra.mxu0 0.0
  %532 = vmatprep.subr.mxu0 0.0
  %533 = vmatpush1.msra.mxu0 0.0
  %534 = vmatprep.subr.mxu0 0.0
  %535 = vmatpush1.msra.mxu0 0.0
  %536 = vmatprep.subr.mxu0 0.0
  %537 = vmatpush1.msra.mxu0 0.0
  %538 = vmatprep.subr.mxu0 0.0
  %539 = vmatpush1.msra.mxu0 0.0
  %540 = vmatprep.subr.mxu0 0.0
  %541 = vmatpush1.msra.mxu0 0.0
  %542 = vmatprep.mubr.f32.mxu0 0.0
  %543 = vmatmul.mubr.f32.gmra.mrb[0].mxu0 %v477
  %v544 = vpop.f32.mrb[0].mxu0
  %v545 = vadd.f32 %v303, %v544
  %v546 = vpop.f32.mrb[0].mxu0
  %v547 = vadd.f32 %v307, %v546
  %548 = vdwg.mxu0
  %549 = vmatprep.subr.mxu0 0.0
  %550 = vmatpush1.msra.mxu0 %v81
  %551 = vmatprep.subr.mxu0 0.0
  %552 = vmatpush1.msra.mxu0 %v84
  %553 = vmatprep.subr.mxu0 0.0
  %554 = vmatpush1.msra.mxu0 %v87
  %555 = vmatprep.subr.mxu0 0.0
  %556 = vmatpush1.msra.mxu0 %v90
  %557 = vmatprep.subr.mxu0 0.0
  %558 = vmatpush1.msra.mxu0 %v93
  %559 = vmatprep.subr.mxu0 0.0
  %560 = vmatpush1.msra.mxu0 %v96
  %561 = vmatprep.subr.mxu0 0.0
  %562 = vmatpush1.msra.mxu0 %v99
  %563 = vmatprep.subr.mxu0 0.0
  %564 = vmatpush1.msra.mxu0 %v102
  %565 = vmatprep.subr.mxu0 0.0
  %566 = vmatpush1.msra.mxu0 %v105
  %567 = vmatprep.subr.mxu0 0.0
  %568 = vmatpush1.msra.mxu0 %v108
  %569 = vmatprep.subr.mxu0 0.0
  %570 = vmatpush1.msra.mxu0 %v111
  %571 = vmatprep.subr.mxu0 0.0
  %572 = vmatpush1.msra.mxu0 %v114
  %573 = vmatprep.subr.mxu0 0.0
  %574 = vmatpush1.msra.mxu0 %v117
  %575 = vmatprep.subr.mxu0 0.0
  %576 = vmatpush1.msra.mxu0 %v120
  %577 = vmatprep.subr.mxu0 0.0
  %578 = vmatpush1.msra.mxu0 %v123
  %579 = vmatprep.subr.mxu0 0.0
  %580 = vmatpush1.msra.mxu0 %v126
  %581 = vmatprep.subr.mxu0 0.0
  %582 = vmatpush1.msra.mxu0 0.0
  %583 = vmatprep.subr.mxu0 0.0
  %584 = vmatpush1.msra.mxu0 0.0
  %585 = vmatprep.subr.mxu0 0.0
  %586 = vmatpush1.msra.mxu0 0.0
  %587 = vmatprep.subr.mxu0 0.0
  %588 = vmatpush1.msra.mxu0 0.0
  %589 = vmatprep.subr.mxu0 0.0
  %590 = vmatpush1.msra.mxu0 0.0
  %591 = vmatprep.subr.mxu0 0.0
  %592 = vmatpush1.msra.mxu0 0.0
  %593 = vmatprep.subr.mxu0 0.0
  %594 = vmatpush1.msra.mxu0 0.0
  %595 = vmatprep.subr.mxu0 0.0
  %596 = vmatpush1.msra.mxu0 0.0
  %597 = vmatprep.subr.mxu0 0.0
  %598 = vmatpush1.msra.mxu0 0.0
  %599 = vmatprep.subr.mxu0 0.0
  %600 = vmatpush1.msra.mxu0 0.0
  %601 = vmatprep.subr.mxu0 0.0
  %602 = vmatpush1.msra.mxu0 0.0
  %603 = vmatprep.subr.mxu0 0.0
  %604 = vmatpush1.msra.mxu0 0.0
  %605 = vmatprep.subr.mxu0 0.0
  %606 = vmatpush1.msra.mxu0 0.0
  %607 = vmatprep.subr.mxu0 0.0
  %608 = vmatpush1.msra.mxu0 0.0
  %609 = vmatprep.subr.mxu0 0.0
  %610 = vmatpush1.msra.mxu0 0.0
  %611 = vmatprep.subr.mxu0 0.0
  %612 = vmatpush1.msra.mxu0 0.0
  %613 = vmatprep.mubr.f32.mxu0 0.0
  %614 = vmatmul.mubr.f32.gmra.mrb[0].mxu0 %v477
  %v615 = vpop.f32.mrb[0].mxu0
  %v616 = vadd.f32 %v311, %v615
  %v617 = vpop.f32.mrb[0].mxu0
  %618 = vdwg.mxu0
  %v620 = vrot.slane %v545, 6
  %v622 = vadd.f32 %v213, %v620
  %v623 = vxor.u32 %v622, 2147483648
  %v624 = vmul.f32 %v623, 1.442695
  %v625 = vpow.pop %v624
  %v626 = vadd.f32 %v625, 1.0
  %v627 = vrcp.pop %v626
  %v628 = vmul.f32 1.0, %v627
  %v630 = vrot.slane %v547, 6
  %v632 = vadd.f32 %v215, %v630
  %v633 = vxor.u32 %v632, 2147483648
  %v634 = vmul.f32 %v633, 1.442695
  %v635 = vpow.pop %v634
  %v636 = vadd.f32 %v635, 1.0
  %v637 = vrcp.pop %v636
  %v638 = vmul.f32 1.0, %v637
  %v640 = vrot.slane %v616, 6
  %v642 = vmul.f32 %v628, %v640
  %v643 = vadd.f32 %v290, %v642
  %v644 = vtanh.pop %v643
  %v645 = vsub.f32 1.0, %v638
  %v646 = vmul.f32 %v645, %v644
  %v648 = vrot.slane %v477, 6
  %v650 = vmul.f32 %v638, %v648
  %v651 = vadd.f32 %v646, %v650
  %v653 = vrot.slane %v651, 2
  %655 = vmatprep.subr.mxu0 %v80
  %656 = vmatpush1.msra.mxu0 %v79
  %657 = vmatprep.subr.mxu0 %v83
  %658 = vmatpush1.msra.mxu0 %v82
  %659 = vmatprep.subr.mxu0 %v86
  %660 = vmatpush1.msra.mxu0 %v85
  %661 = vmatprep.subr.mxu0 %v89
  %662 = vmatpush1.msra.mxu0 %v88
  %663 = vmatprep.subr.mxu0 %v92
  %664 = vmatpush1.msra.mxu0 %v91
  %665 = vmatprep.subr.mxu0 %v95
  %666 = vmatpush1.msra.mxu0 %v94
  %667 = vmatprep.subr.mxu0 %v98
  %668 = vmatpush1.msra.mxu0 %v97
  %669 = vmatprep.subr.mxu0 %v101
  %670 = vmatpush1.msra.mxu0 %v100
  %671 = vmatprep.subr.mxu0 %v104
  %672 = vmatpush1.msra.mxu0 %v103
  %673 = vmatprep.subr.mxu0 %v107
  %674 = vmatpush1.msra.mxu0 %v106
  %675 = vmatprep.subr.mxu0 %v110
  %676 = vmatpush1.msra.mxu0 %v109
  %677 = vmatprep.subr.mxu0 %v113
  %678 = vmatpush1.msra.mxu0 %v112
  %679 = vmatprep.subr.mxu0 %v116
  %680 = vmatpush1.msra.mxu0 %v115
  %681 = vmatprep.subr.mxu0 %v119
  %682 = vmatpush1.msra.mxu0 %v118
  %683 = vmatprep.subr.mxu0 %v122
  %684 = vmatpush1.msra.mxu0 %v121
  %685 = vmatprep.subr.mxu0 %v125
  %686 = vmatpush1.msra.mxu0 %v124
  %687 = vmatprep.subr.mxu0 0.0
  %688 = vmatpush1.msra.mxu0 0.0
  %689 = vmatprep.subr.mxu0 0.0
  %690 = vmatpush1.msra.mxu0 0.0
  %691 = vmatprep.subr.mxu0 0.0
  %692 = vmatpush1.msra.mxu0 0.0
  %693 = vmatprep.subr.mxu0 0.0
  %694 = vmatpush1.msra.mxu0 0.0
  %695 = vmatprep.subr.mxu0 0.0
  %696 = vmatpush1.msra.mxu0 0.0
  %697 = vmatprep.subr.mxu0 0.0
  %698 = vmatpush1.msra.mxu0 0.0
  %699 = vmatprep.subr.mxu0 0.0
  %700 = vmatpush1.msra.mxu0 0.0
  %701 = vmatprep.subr.mxu0 0.0
  %702 = vmatpush1.msra.mxu0 0.0
  %703 = vmatprep.subr.mxu0 0.0
  %704 = vmatpush1.msra.mxu0 0.0
  %705 = vmatprep.subr.mxu0 0.0
  %706 = vmatpush1.msra.mxu0 0.0
  %707 = vmatprep.subr.mxu0 0.0
  %708 = vmatpush1.msra.mxu0 0.0
  %709 = vmatprep.subr.mxu0 0.0
  %710 = vmatpush1.msra.mxu0 0.0
  %711 = vmatprep.subr.mxu0 0.0
  %712 = vmatpush1.msra.mxu0 0.0
  %713 = vmatprep.subr.mxu0 0.0
  %714 = vmatpush1.msra.mxu0 0.0
  %715 = vmatprep.subr.mxu0 0.0
  %716 = vmatpush1.msra.mxu0 0.0
  %717 = vmatprep.subr.mxu0 0.0
  %718 = vmatpush1.msra.mxu0 0.0
  %719 = vmatprep.mubr.f32.mxu0 0.0
  %720 = vmatmul.mubr.f32.gmra.mrb[0].mxu0 %v653
  %v721 = vpop.f32.mrb[0].mxu0
  %v722 = vadd.f32 %v303, %v721
  %v723 = vpop.f32.mrb[0].mxu0
  %v724 = vadd.f32 %v307, %v723
  %725 = vdwg.mxu0
  %726 = vmatprep.subr.mxu0 0.0
  %727 = vmatpush1.msra.mxu0 %v81
  %728 = vmatprep.subr.mxu0 0.0
  %729 = vmatpush1.msra.mxu0 %v84
  %730 = vmatprep.subr.mxu0 0.0
  %731 = vmatpush1.msra.mxu0 %v87
  %732 = vmatprep.subr.mxu0 0.0
  %733 = vmatpush1.msra.mxu0 %v90
  %734 = vmatprep.subr.mxu0 0.0
  %735 = vmatpush1.msra.mxu0 %v93
  %736 = vmatprep.subr.mxu0 0.0
  %737 = vmatpush1.msra.mxu0 %v96
  %738 = vmatprep.subr.mxu0 0.0
  %739 = vmatpush1.msra.mxu0 %v99
  %740 = vmatprep.subr.mxu0 0.0
  %741 = vmatpush1.msra.mxu0 %v102
  %742 = vmatprep.subr.mxu0 0.0
  %743 = vmatpush1.msra.mxu0 %v105
  %744 = vmatprep.subr.mxu0 0.0
  %745 = vmatpush1.msra.mxu0 %v108
  %746 = vmatprep.subr.mxu0 0.0
  %747 = vmatpush1.msra.mxu0 %v111
  %748 = vmatprep.subr.mxu0 0.0
  %749 = vmatpush1.msra.mxu0 %v114
  %750 = vmatprep.subr.mxu0 0.0
  %751 = vmatpush1.msra.mxu0 %v117
  %752 = vmatprep.subr.mxu0 0.0
  %753 = vmatpush1.msra.mxu0 %v120
  %754 = vmatprep.subr.mxu0 0.0
  %755 = vmatpush1.msra.mxu0 %v123
  %756 = vmatprep.subr.mxu0 0.0
  %757 = vmatpush1.msra.mxu0 %v126
  %758 = vmatprep.subr.mxu0 0.0
  %759 = vmatpush1.msra.mxu0 0.0
  %760 = vmatprep.subr.mxu0 0.0
  %761 = vmatpush1.msra.mxu0 0.0
  %762 = vmatprep.subr.mxu0 0.0
  %763 = vmatpush1.msra.mxu0 0.0
  %764 = vmatprep.subr.mxu0 0.0
  %765 = vmatpush1.msra.mxu0 0.0
  %766 = vmatprep.subr.mxu0 0.0
  %767 = vmatpush1.msra.mxu0 0.0
  %768 = vmatprep.subr.mxu0 0.0
  %769 = vmatpush1.msra.mxu0 0.0
  %770 = vmatprep.subr.mxu0 0.0
  %771 = vmatpush1.msra.mxu0 0.0
  %772 = vmatprep.subr.mxu0 0.0
  %773 = vmatpush1.msra.mxu0 0.0
  %774 = vmatprep.subr.mxu0 0.0
  %775 = vmatpush1.msra.mxu0 0.0
  %776 = vmatprep.subr.mxu0 0.0
  %777 = vmatpush1.msra.mxu0 0.0
  %778 = vmatprep.subr.mxu0 0.0
  %779 = vmatpush1.msra.mxu0 0.0
  %780 = vmatprep.subr.mxu0 0.0
  %781 = vmatpush1.msra.mxu0 0.0
  %782 = vmatprep.subr.mxu0 0.0
  %783 = vmatpush1.msra.mxu0 0.0
  %784 = vmatprep.subr.mxu0 0.0
  %785 = vmatpush1.msra.mxu0 0.0
  %786 = vmatprep.subr.mxu0 0.0
  %787 = vmatpush1.msra.mxu0 0.0
  %788 = vmatprep.subr.mxu0 0.0
  %789 = vmatpush1.msra.mxu0 0.0
  %790 = vmatprep.mubr.f32.mxu0 0.0
  %791 = vmatmul.mubr.f32.gmra.mrb[0].mxu0 %v653
  %v792 = vpop.f32.mrb[0].mxu0
  %v793 = vadd.f32 %v311, %v792
  %v794 = vpop.f32.mrb[0].mxu0
  %795 = vdwg.mxu0
  %v797 = vrot.slane %v722, 4
  %v799 = vadd.f32 %v213, %v797
  %v800 = vxor.u32 %v799, 2147483648
  %v801 = vmul.f32 %v800, 1.442695
  %v802 = vpow.pop %v801
  %v803 = vadd.f32 %v802, 1.0
  %v804 = vrcp.pop %v803
  %v805 = vmul.f32 1.0, %v804
  %v807 = vrot.slane %v724, 4
  %v809 = vadd.f32 %v215, %v807
  %v810 = vxor.u32 %v809, 2147483648
  %v811 = vmul.f32 %v810, 1.442695
  %v812 = vpow.pop %v811
  %v813 = vadd.f32 %v812, 1.0
  %v814 = vrcp.pop %v813
  %v815 = vmul.f32 1.0, %v814
  %v817 = vrot.slane %v793, 4
  %v819 = vmul.f32 %v805, %v817
  %v820 = vadd.f32 %v290, %v819
  %v821 = vtanh.pop %v820
  %v822 = vsub.f32 1.0, %v815
  %v823 = vmul.f32 %v822, %v821
  %v824 = vrot.slane %v651, 6
  %v826 = vmul.f32 %v815, %v824
  %v827 = vadd.f32 %v823, %v826
  %v829 = vrot.slane %v827, 4
  %831 = vmatprep.subr.mxu0 %v80
  %832 = vmatpush1.msra.mxu0 %v79
  %833 = vmatprep.subr.mxu0 %v83
  %834 = vmatpush1.msra.mxu0 %v82
  %835 = vmatprep.subr.mxu0 %v86
  %836 = vmatpush1.msra.mxu0 %v85
  %837 = vmatprep.subr.mxu0 %v89
  %838 = vmatpush1.msra.mxu0 %v88
  %839 = vmatprep.subr.mxu0 %v92
  %840 = vmatpush1.msra.mxu0 %v91
  %841 = vmatprep.subr.mxu0 %v95
  %842 = vmatpush1.msra.mxu0 %v94
  %843 = vmatprep.subr.mxu0 %v98
  %844 = vmatpush1.msra.mxu0 %v97
  %845 = vmatprep.subr.mxu0 %v101
  %846 = vmatpush1.msra.mxu0 %v100
  %847 = vmatprep.subr.mxu0 %v104
  %848 = vmatpush1.msra.mxu0 %v103
  %849 = vmatprep.subr.mxu0 %v107
  %850 = vmatpush1.msra.mxu0 %v106
  %851 = vmatprep.subr.mxu0 %v110
  %852 = vmatpush1.msra.mxu0 %v109
  %853 = vmatprep.subr.mxu0 %v113
  %854 = vmatpush1.msra.mxu0 %v112
  %855 = vmatprep.subr.mxu0 %v116
  %856 = vmatpush1.msra.mxu0 %v115
  %857 = vmatprep.subr.mxu0 %v119
  %858 = vmatpush1.msra.mxu0 %v118
  %859 = vmatprep.subr.mxu0 %v122
  %860 = vmatpush1.msra.mxu0 %v121
  %861 = vmatprep.subr.mxu0 %v125
  %862 = vmatpush1.msra.mxu0 %v124
  %863 = vmatprep.subr.mxu0 0.0
  %864 = vmatpush1.msra.mxu0 0.0
  %865 = vmatprep.subr.mxu0 0.0
  %866 = vmatpush1.msra.mxu0 0.0
  %867 = vmatprep.subr.mxu0 0.0
  %868 = vmatpush1.msra.mxu0 0.0
  %869 = vmatprep.subr.mxu0 0.0
  %870 = vmatpush1.msra.mxu0 0.0
  %871 = vmatprep.subr.mxu0 0.0
  %872 = vmatpush1.msra.mxu0 0.0
  %873 = vmatprep.subr.mxu0 0.0
  %874 = vmatpush1.msra.mxu0 0.0
  %875 = vmatprep.subr.mxu0 0.0
  %876 = vmatpush1.msra.mxu0 0.0
  %877 = vmatprep.subr.mxu0 0.0
  %878 = vmatpush1.msra.mxu0 0.0
  %879 = vmatprep.subr.mxu0 0.0
  %880 = vmatpush1.msra.mxu0 0.0
  %881 = vmatprep.subr.mxu0 0.0
  %882 = vmatpush1.msra.mxu0 0.0
  %883 = vmatprep.subr.mxu0 0.0
  %884 = vmatpush1.msra.mxu0 0.0
  %885 = vmatprep.subr.mxu0 0.0
  %886 = vmatpush1.msra.mxu0 0.0
  %887 = vmatprep.subr.mxu0 0.0
  %888 = vmatpush1.msra.mxu0 0.0
  %889 = vmatprep.subr.mxu0 0.0
  %890 = vmatpush1.msra.mxu0 0.0
  %891 = vmatprep.subr.mxu0 0.0
  %892 = vmatpush1.msra.mxu0 0.0
  %893 = vmatprep.subr.mxu0 0.0
  %894 = vmatpush1.msra.mxu0 0.0
  %895 = vmatprep.mubr.f32.mxu0 0.0
  %896 = vmatmul.mubr.f32.gmra.mrb[0].mxu0 %v829
  %v897 = vpop.f32.mrb[0].mxu0
  %v898 = vadd.f32 %v303, %v897
  %v899 = vpop.f32.mrb[0].mxu0
  %v900 = vadd.f32 %v307, %v899
  %901 = vdwg.mxu0
  %902 = vmatprep.subr.mxu0 0.0
  %903 = vmatpush1.msra.mxu0 %v81
  %904 = vmatprep.subr.mxu0 0.0
  %905 = vmatpush1.msra.mxu0 %v84
  %906 = vmatprep.subr.mxu0 0.0
  %907 = vmatpush1.msra.mxu0 %v87
  %908 = vmatprep.subr.mxu0 0.0
  %909 = vmatpush1.msra.mxu0 %v90
  %910 = vmatprep.subr.mxu0 0.0
  %911 = vmatpush1.msra.mxu0 %v93
  %912 = vmatprep.subr.mxu0 0.0
  %913 = vmatpush1.msra.mxu0 %v96
  %914 = vmatprep.subr.mxu0 0.0
  %915 = vmatpush1.msra.mxu0 %v99
  %916 = vmatprep.subr.mxu0 0.0
  %917 = vmatpush1.msra.mxu0 %v102
  %918 = vmatprep.subr.mxu0 0.0
  %919 = vmatpush1.msra.mxu0 %v105
  %920 = vmatprep.subr.mxu0 0.0
  %921 = vmatpush1.msra.mxu0 %v108
  %922 = vmatprep.subr.mxu0 0.0
  %923 = vmatpush1.msra.mxu0 %v111
  %924 = vmatprep.subr.mxu0 0.0
  %925 = vmatpush1.msra.mxu0 %v114
  %926 = vmatprep.subr.mxu0 0.0
  %927 = vmatpush1.msra.mxu0 %v117
  %928 = vmatprep.subr.mxu0 0.0
  %929 = vmatpush1.msra.mxu0 %v120
  %930 = vmatprep.subr.mxu0 0.0
  %931 = vmatpush1.msra.mxu0 %v123
  %932 = vmatprep.subr.mxu0 0.0
  %933 = vmatpush1.msra.mxu0 %v126
  %934 = vmatprep.subr.mxu0 0.0
  %935 = vmatpush1.msra.mxu0 0.0
  %936 = vmatprep.subr.mxu0 0.0
  %937 = vmatpush1.msra.mxu0 0.0
  %938 = vmatprep.subr.mxu0 0.0
  %939 = vmatpush1.msra.mxu0 0.0
  %940 = vmatprep.subr.mxu0 0.0
  %941 = vmatpush1.msra.mxu0 0.0
  %942 = vmatprep.subr.mxu0 0.0
  %943 = vmatpush1.msra.mxu0 0.0
  %944 = vmatprep.subr.mxu0 0.0
  %945 = vmatpush1.msra.mxu0 0.0
  %946 = vmatprep.subr.mxu0 0.0
  %947 = vmatpush1.msra.mxu0 0.0
  %948 = vmatprep.subr.mxu0 0.0
  %949 = vmatpush1.msra.mxu0 0.0
  %950 = vmatprep.subr.mxu0 0.0
  %951 = vmatpush1.msra.mxu0 0.0
  %952 = vmatprep.subr.mxu0 0.0
  %953 = vmatpush1.msra.mxu0 0.0
  %954 = vmatprep.subr.mxu0 0.0
  %955 = vmatpush1.msra.mxu0 0.0
  %956 = vmatprep.subr.mxu0 0.0
  %957 = vmatpush1.msra.mxu0 0.0
  %958 = vmatprep.subr.mxu0 0.0
  %959 = vmatpush1.msra.mxu0 0.0
  %960 = vmatprep.subr.mxu0 0.0
  %961 = vmatpush1.msra.mxu0 0.0
  %962 = vmatprep.subr.mxu0 0.0
  %963 = vmatpush1.msra.mxu0 0.0
  %964 = vmatprep.subr.mxu0 0.0
  %965 = vmatpush1.msra.mxu0 0.0
  %966 = vmatprep.mubr.f32.mxu0 0.0
  %967 = vmatmul.mubr.f32.gmra.mrb[0].mxu0 %v829
  %v968 = vpop.f32.mrb[0].mxu0
  %v969 = vadd.f32 %v311, %v968
  %v970 = vpop.f32.mrb[0].mxu0
  %971 = vdwg.mxu0
  %v973 = vrot.slane %v898, 2
  %v975 = vadd.f32 %v213, %v973
  %v976 = vxor.u32 %v975, 2147483648
  %v977 = vmul.f32 %v976, 1.442695
  %v978 = vpow.pop %v977
  %v979 = vadd.f32 %v978, 1.0
  %v980 = vrcp.pop %v979
  %v981 = vmul.f32 1.0, %v980
  %v983 = vrot.slane %v900, 2
  %v985 = vadd.f32 %v215, %v983
  %v986 = vxor.u32 %v985, 2147483648
  %v987 = vmul.f32 %v986, 1.442695
  %v988 = vpow.pop %v987
  %v989 = vadd.f32 %v988, 1.0
  %v990 = vrcp.pop %v989
  %v991 = vmul.f32 1.0, %v990
  %v993 = vrot.slane %v969, 2
  %v995 = vmul.f32 %v981, %v993
  %v996 = vadd.f32 %v290, %v995
  %v997 = vtanh.pop %v996
  %v998 = vsub.f32 1.0, %v991
  %v999 = vmul.f32 %v998, %v997
  %v1000 = vrot.slane %v827, 6
  %v1002 = vmul.f32 %v991, %v1000
  %v1003 = vadd.f32 %v999, %v1002
  %v1005 = vrot.slane %v1003, 6
  %1007 = vmatprep.subr.mxu0 %v80
  %1008 = vmatpush1.msra.mxu0 %v79
  %1009 = vmatprep.subr.mxu0 %v83
  %1010 = vmatpush1.msra.mxu0 %v82
  %1011 = vmatprep.subr.mxu0 %v86
  %1012 = vmatpush1.msra.mxu0 %v85
  %1013 = vmatprep.subr.mxu0 %v89
  %1014 = vmatpush1.msra.mxu0 %v88
  %1015 = vmatprep.subr.mxu0 %v92
  %1016 = vmatpush1.msra.mxu0 %v91
  %1017 = vmatprep.subr.mxu0 %v95
  %1018 = vmatpush1.msra.mxu0 %v94
  %1019 = vmatprep.subr.mxu0 %v98
  %1020 = vmatpush1.msra.mxu0 %v97
  %1021 = vmatprep.subr.mxu0 %v101
  %1022 = vmatpush1.msra.mxu0 %v100
  %1023 = vmatprep.subr.mxu0 %v104
  %1024 = vmatpush1.msra.mxu0 %v103
  %1025 = vmatprep.subr.mxu0 %v107
  %1026 = vmatpush1.msra.mxu0 %v106
  %1027 = vmatprep.subr.mxu0 %v110
  %1028 = vmatpush1.msra.mxu0 %v109
  %1029 = vmatprep.subr.mxu0 %v113
  %1030 = vmatpush1.msra.mxu0 %v112
  %1031 = vmatprep.subr.mxu0 %v116
  %1032 = vmatpush1.msra.mxu0 %v115
  %1033 = vmatprep.subr.mxu0 %v119
  %1034 = vmatpush1.msra.mxu0 %v118
  %1035 = vmatprep.subr.mxu0 %v122
  %1036 = vmatpush1.msra.mxu0 %v121
  %1037 = vmatprep.subr.mxu0 %v125
  %1038 = vmatpush1.msra.mxu0 %v124
  %1039 = vmatprep.subr.mxu0 0.0
  %1040 = vmatpush1.msra.mxu0 0.0
  %1041 = vmatprep.subr.mxu0 0.0
  %1042 = vmatpush1.msra.mxu0 0.0
  %1043 = vmatprep.subr.mxu0 0.0
  %1044 = vmatpush1.msra.mxu0 0.0
  %1045 = vmatprep.subr.mxu0 0.0
  %1046 = vmatpush1.msra.mxu0 0.0
  %1047 = vmatprep.subr.mxu0 0.0
  %1048 = vmatpush1.msra.mxu0 0.0
  %1049 = vmatprep.subr.mxu0 0.0
  %1050 = vmatpush1.msra.mxu0 0.0
  %1051 = vmatprep.subr.mxu0 0.0
  %1052 = vmatpush1.msra.mxu0 0.0
  %1053 = vmatprep.subr.mxu0 0.0
  %1054 = vmatpush1.msra.mxu0 0.0
  %1055 = vmatprep.subr.mxu0 0.0
  %1056 = vmatpush1.msra.mxu0 0.0
  %1057 = vmatprep.subr.mxu0 0.0
  %1058 = vmatpush1.msra.mxu0 0.0
  %1059 = vmatprep.subr.mxu0 0.0
  %1060 = vmatpush1.msra.mxu0 0.0
  %1061 = vmatprep.subr.mxu0 0.0
  %1062 = vmatpush1.msra.mxu0 0.0
  %1063 = vmatprep.subr.mxu0 0.0
  %1064 = vmatpush1.msra.mxu0 0.0
  %1065 = vmatprep.subr.mxu0 0.0
  %1066 = vmatpush1.msra.mxu0 0.0
  %1067 = vmatprep.subr.mxu0 0.0
  %1068 = vmatpush1.msra.mxu0 0.0
  %1069 = vmatprep.subr.mxu0 0.0
  %1070 = vmatpush1.msra.mxu0 0.0
  %1071 = vmatprep.mubr.f32.mxu0 0.0
  %1072 = vmatmul.mubr.f32.gmra.mrb[0].mxu0 %v1005
  %v1073 = vpop.f32.mrb[0].mxu0
  %v1074 = vadd.f32 %v303, %v1073
  %v1075 = vpop.f32.mrb[0].mxu0
  %v1076 = vadd.f32 %v307, %v1075
  %1077 = vdwg.mxu0
  %1078 = vmatprep.subr.mxu0 0.0
  %1079 = vmatpush1.msra.mxu0 %v81
  %1080 = vmatprep.subr.mxu0 0.0
  %1081 = vmatpush1.msra.mxu0 %v84
  %1082 = vmatprep.subr.mxu0 0.0
  %1083 = vmatpush1.msra.mxu0 %v87
  %1084 = vmatprep.subr.mxu0 0.0
  %1085 = vmatpush1.msra.mxu0 %v90
  %1086 = vmatprep.subr.mxu0 0.0
  %1087 = vmatpush1.msra.mxu0 %v93
  %1088 = vmatprep.subr.mxu0 0.0
  %1089 = vmatpush1.msra.mxu0 %v96
  %1090 = vmatprep.subr.mxu0 0.0
  %1091 = vmatpush1.msra.mxu0 %v99
  %1092 = vmatprep.subr.mxu0 0.0
  %1093 = vmatpush1.msra.mxu0 %v102
  %1094 = vmatprep.subr.mxu0 0.0
  %1095 = vmatpush1.msra.mxu0 %v105
  %1096 = vmatprep.subr.mxu0 0.0
  %1097 = vmatpush1.msra.mxu0 %v108
  %1098 = vmatprep.subr.mxu0 0.0
  %1099 = vmatpush1.msra.mxu0 %v111
  %1100 = vmatprep.subr.mxu0 0.0
  %1101 = vmatpush1.msra.mxu0 %v114
  %1102 = vmatprep.subr.mxu0 0.0
  %1103 = vmatpush1.msra.mxu0 %v117
  %1104 = vmatprep.subr.mxu0 0.0
  %1105 = vmatpush1.msra.mxu0 %v120
  %1106 = vmatprep.subr.mxu0 0.0
  %1107 = vmatpush1.msra.mxu0 %v123
  %1108 = vmatprep.subr.mxu0 0.0
  %1109 = vmatpush1.msra.mxu0 %v126
  %1110 = vmatprep.subr.mxu0 0.0
  %1111 = vmatpush1.msra.mxu0 0.0
  %1112 = vmatprep.subr.mxu0 0.0
  %1113 = vmatpush1.msra.mxu0 0.0
  %1114 = vmatprep.subr.mxu0 0.0
  %1115 = vmatpush1.msra.mxu0 0.0
  %1116 = vmatprep.subr.mxu0 0.0
  %1117 = vmatpush1.msra.mxu0 0.0
  %1118 = vmatprep.subr.mxu0 0.0
  %1119 = vmatpush1.msra.mxu0 0.0
  %1120 = vmatprep.subr.mxu0 0.0
  %1121 = vmatpush1.msra.mxu0 0.0
  %1122 = vmatprep.subr.mxu0 0.0
  %1123 = vmatpush1.msra.mxu0 0.0
  %1124 = vmatprep.subr.mxu0 0.0
  %1125 = vmatpush1.msra.mxu0 0.0
  %1126 = vmatprep.subr.mxu0 0.0
  %1127 = vmatpush1.msra.mxu0 0.0
  %1128 = vmatprep.subr.mxu0 0.0
  %1129 = vmatpush1.msra.mxu0 0.0
  %1130 = vmatprep.subr.mxu0 0.0
  %1131 = vmatpush1.msra.mxu0 0.0
  %1132 = vmatprep.subr.mxu0 0.0
  %1133 = vmatpush1.msra.mxu0 0.0
  %1134 = vmatprep.subr.mxu0 0.0
  %1135 = vmatpush1.msra.mxu0 0.0
  %1136 = vmatprep.subr.mxu0 0.0
  %1137 = vmatpush1.msra.mxu0 0.0
  %1138 = vmatprep.subr.mxu0 0.0
  %1139 = vmatpush1.msra.mxu0 0.0
  %1140 = vmatprep.subr.mxu0 0.0
  %1141 = vmatpush1.msra.mxu0 0.0
  %1142 = vmatprep.mubr.f32.mxu0 0.0
  %1143 = vmatmul.mubr.f32.gmra.mrb[0].mxu0 %v1005
  %v1144 = vpop.f32.mrb[0].mxu0
  %v1145 = vadd.f32 %v311, %v1144
  %v1146 = vpop.f32.mrb[0].mxu0
  %1147 = vdwg.mxu0
  %v1148 = vadd.f32 %v219, %v1074
  %v1149 = vxor.u32 %v1148, 2147483648
  %v1150 = vmul.f32 %v1149, 1.442695
  %v1151 = vpow.pop %v1150
  %v1152 = vadd.f32 %v1151, 1.0
  %v1153 = vrcp.pop %v1152
  %v1154 = vmul.f32 1.0, %v1153
  %v1155 = vadd.f32 %v221, %v1076
  %v1156 = vxor.u32 %v1155, 2147483648
  %v1157 = vmul.f32 %v1156, 1.442695
  %v1158 = vpow.pop %v1157
  %v1159 = vadd.f32 %v1158, 1.0
  %v1160 = vrcp.pop %v1159
  %v1161 = vmul.f32 1.0, %v1160
  %v1162 = vmul.f32 %v1154, %v1145
  %v1163 = vadd.f32 %v295, %v1162
  %v1164 = vtanh.pop %v1163
  %v1165 = vsub.f32 1.0, %v1161
  %v1166 = vmul.f32 %v1165, %v1164
  %v1167 = vmul.f32 %v1161, %v1005
  %v1168 = vadd.f32 %v1166, %v1167
  %1169 = vmatprep.subr.mxu0 %v80
  %1170 = vmatpush1.msra.mxu0 %v79
  %1171 = vmatprep.subr.mxu0 %v83
  %1172 = vmatpush1.msra.mxu0 %v82
  %1173 = vmatprep.subr.mxu0 %v86
  %1174 = vmatpush1.msra.mxu0 %v85
  %1175 = vmatprep.subr.mxu0 %v89
  %1176 = vmatpush1.msra.mxu0 %v88
  %1177 = vmatprep.subr.mxu0 %v92
  %1178 = vmatpush1.msra.mxu0 %v91
  %1179 = vmatprep.subr.mxu0 %v95
  %1180 = vmatpush1.msra.mxu0 %v94
  %1181 = vmatprep.subr.mxu0 %v98
  %1182 = vmatpush1.msra.mxu0 %v97
  %1183 = vmatprep.subr.mxu0 %v101
  %1184 = vmatpush1.msra.mxu0 %v100
  %1185 = vmatprep.subr.mxu0 %v104
  %1186 = vmatpush1.msra.mxu0 %v103
  %1187 = vmatprep.subr.mxu0 %v107
  %1188 = vmatpush1.msra.mxu0 %v106
  %1189 = vmatprep.subr.mxu0 %v110
  %1190 = vmatpush1.msra.mxu0 %v109
  %1191 = vmatprep.subr.mxu0 %v113
  %1192 = vmatpush1.msra.mxu0 %v112
  %1193 = vmatprep.subr.mxu0 %v116
  %1194 = vmatpush1.msra.mxu0 %v115
  %1195 = vmatprep.subr.mxu0 %v119
  %1196 = vmatpush1.msra.mxu0 %v118
  %1197 = vmatprep.subr.mxu0 %v122
  %1198 = vmatpush1.msra.mxu0 %v121
  %1199 = vmatprep.subr.mxu0 %v125
  %1200 = vmatpush1.msra.mxu0 %v124
  %1201 = vmatprep.subr.mxu0 0.0
  %1202 = vmatpush1.msra.mxu0 0.0
  %1203 = vmatprep.subr.mxu0 0.0
  %1204 = vmatpush1.msra.mxu0 0.0
  %1205 = vmatprep.subr.mxu0 0.0
  %1206 = vmatpush1.msra.mxu0 0.0
  %1207 = vmatprep.subr.mxu0 0.0
  %1208 = vmatpush1.msra.mxu0 0.0
  %1209 = vmatprep.subr.mxu0 0.0
  %1210 = vmatpush1.msra.mxu0 0.0
  %1211 = vmatprep.subr.mxu0 0.0
  %1212 = vmatpush1.msra.mxu0 0.0
  %1213 = vmatprep.subr.mxu0 0.0
  %1214 = vmatpush1.msra.mxu0 0.0
  %1215 = vmatprep.subr.mxu0 0.0
  %1216 = vmatpush1.msra.mxu0 0.0
  %1217 = vmatprep.subr.mxu0 0.0
  %1218 = vmatpush1.msra.mxu0 0.0
  %1219 = vmatprep.subr.mxu0 0.0
  %1220 = vmatpush1.msra.mxu0 0.0
  %1221 = vmatprep.subr.mxu0 0.0
  %1222 = vmatpush1.msra.mxu0 0.0
  %1223 = vmatprep.subr.mxu0 0.0
  %1224 = vmatpush1.msra.mxu0 0.0
  %1225 = vmatprep.subr.mxu0 0.0
  %1226 = vmatpush1.msra.mxu0 0.0
  %1227 = vmatprep.subr.mxu0 0.0
  %1228 = vmatpush1.msra.mxu0 0.0
  %1229 = vmatprep.subr.mxu0 0.0
  %1230 = vmatpush1.msra.mxu0 0.0
  %1231 = vmatprep.subr.mxu0 0.0
  %1232 = vmatpush1.msra.mxu0 0.0
  %1233 = vmatprep.mubr.f32.mxu0 0.0
  %1234 = vmatmul.mubr.f32.gmra.mrb[0].mxu0 %v1168
  %v1235 = vpop.f32.mrb[0].mxu0
  %v1236 = vadd.f32 %v303, %v1235
  %v1237 = vpop.f32.mrb[0].mxu0
  %v1238 = vadd.f32 %v307, %v1237
  %1239 = vdwg.mxu0
  %1240 = vmatprep.subr.mxu0 0.0
  %1241 = vmatpush1.msra.mxu0 %v81
  %1242 = vmatprep.subr.mxu0 0.0
  %1243 = vmatpush1.msra.mxu0 %v84
  %1244 = vmatprep.subr.mxu0 0.0
  %1245 = vmatpush1.msra.mxu0 %v87
  %1246 = vmatprep.subr.mxu0 0.0
  %1247 = vmatpush1.msra.mxu0 %v90
  %1248 = vmatprep.subr.mxu0 0.0
  %1249 = vmatpush1.msra.mxu0 %v93
  %1250 = vmatprep.subr.mxu0 0.0
  %1251 = vmatpush1.msra.mxu0 %v96
  %1252 = vmatprep.subr.mxu0 0.0
  %1253 = vmatpush1.msra.mxu0 %v99
  %1254 = vmatprep.subr.mxu0 0.0
  %1255 = vmatpush1.msra.mxu0 %v102
  %1256 = vmatprep.subr.mxu0 0.0
  %1257 = vmatpush1.msra.mxu0 %v105
  %1258 = vmatprep.subr.mxu0 0.0
  %1259 = vmatpush1.msra.mxu0 %v108
  %1260 = vmatprep.subr.mxu0 0.0
  %1261 = vmatpush1.msra.mxu0 %v111
  %1262 = vmatprep.subr.mxu0 0.0
  %1263 = vmatpush1.msra.mxu0 %v114
  %1264 = vmatprep.subr.mxu0 0.0
  %1265 = vmatpush1.msra.mxu0 %v117
  %1266 = vmatprep.subr.mxu0 0.0
  %1267 = vmatpush1.msra.mxu0 %v120
  %1268 = vmatprep.subr.mxu0 0.0
  %1269 = vmatpush1.msra.mxu0 %v123
  %1270 = vmatprep.subr.mxu0 0.0
  %1271 = vmatpush1.msra.mxu0 %v126
  %1272 = vmatprep.subr.mxu0 0.0
  %1273 = vmatpush1.msra.mxu0 0.0
  %1274 = vmatprep.subr.mxu0 0.0
  %1275 = vmatpush1.msra.mxu0 0.0
  %1276 = vmatprep.subr.mxu0 0.0
  %1277 = vmatpush1.msra.mxu0 0.0
  %1278 = vmatprep.subr.mxu0 0.0
  %1279 = vmatpush1.msra.mxu0 0.0
  %1280 = vmatprep.subr.mxu0 0.0
  %1281 = vmatpush1.msra.mxu0 0.0
  %1282 = vmatprep.subr.mxu0 0.0
  %1283 = vmatpush1.msra.mxu0 0.0
  %1284 = vmatprep.subr.mxu0 0.0
  %1285 = vmatpush1.msra.mxu0 0.0
  %1286 = vmatprep.subr.mxu0 0.0
  %1287 = vmatpush1.msra.mxu0 0.0
  %1288 = vmatprep.subr.mxu0 0.0
  %1289 = vmatpush1.msra.mxu0 0.0
  %1290 = vmatprep.subr.mxu0 0.0
  %1291 = vmatpush1.msra.mxu0 0.0
  %1292 = vmatprep.subr.mxu0 0.0
  %1293 = vmatpush1.msra.mxu0 0.0
  %1294 = vmatprep.subr.mxu0 0.0
  %1295 = vmatpush1.msra.mxu0 0.0
  %1296 = vmatprep.subr.mxu0 0.0
  %1297 = vmatpush1.msra.mxu0 0.0
  %1298 = vmatprep.subr.mxu0 0.0
  %1299 = vmatpush1.msra.mxu0 0.0
  %1300 = vmatprep.subr.mxu0 0.0
  %1301 = vmatpush1.msra.mxu0 0.0
  %1302 = vmatprep.subr.mxu0 0.0
  %1303 = vmatpush1.msra.mxu0 0.0
  %1304 = vmatprep.mubr.f32.mxu0 0.0
  %1305 = vmatmul.mubr.f32.gmra.mrb[0].mxu0 %v1168
  %v1306 = vpop.f32.mrb[0].mxu0
  %v1307 = vadd.f32 %v311, %v1306
  %v1308 = vpop.f32.mrb[0].mxu0
  %1309 = vdwg.mxu0
  %v1311 = vrot.slane %v1236, 6
  %v1313 = vadd.f32 %v219, %v1311
  %v1314 = vxor.u32 %v1313, 2147483648
  %v1315 = vmul.f32 %v1314, 1.442695
  %v1316 = vpow.pop %v1315
  %v1317 = vadd.f32 %v1316, 1.0
  %v1318 = vrcp.pop %v1317
  %v1319 = vmul.f32 1.0, %v1318
  %v1321 = vrot.slane %v1238, 6
  %v1323 = vadd.f32 %v221, %v1321
  %v1324 = vxor.u32 %v1323, 2147483648
  %v1325 = vmul.f32 %v1324, 1.442695
  %v1326 = vpow.pop %v1325
  %v1327 = vadd.f32 %v1326, 1.0
  %v1328 = vrcp.pop %v1327
  %v1329 = vmul.f32 1.0, %v1328
  %v1331 = vrot.slane %v1307, 6
  %v1333 = vmul.f32 %v1319, %v1331
  %v1334 = vadd.f32 %v295, %v1333
  %v1335 = vtanh.pop %v1334
  %v1336 = vsub.f32 1.0, %v1329
  %v1337 = vmul.f32 %v1336, %v1335
  %v1339 = vrot.slane %v1168, 6
  %v1341 = vmul.f32 %v1329, %v1339
  %v1342 = vadd.f32 %v1337, %v1341
  %v1344 = vrot.slane %v1342, 2
  %1346 = vmatprep.subr.mxu0 %v80
  %1347 = vmatpush1.msra.mxu0 %v79
  %1348 = vmatprep.subr.mxu0 %v83
  %1349 = vmatpush1.msra.mxu0 %v82
  %1350 = vmatprep.subr.mxu0 %v86
  %1351 = vmatpush1.msra.mxu0 %v85
  %1352 = vmatprep.subr.mxu0 %v89
  %1353 = vmatpush1.msra.mxu0 %v88
  %1354 = vmatprep.subr.mxu0 %v92
  %1355 = vmatpush1.msra.mxu0 %v91
  %1356 = vmatprep.subr.mxu0 %v95
  %1357 = vmatpush1.msra.mxu0 %v94
  %1358 = vmatprep.subr.mxu0 %v98
  %1359 = vmatpush1.msra.mxu0 %v97
  %1360 = vmatprep.subr.mxu0 %v101
  %1361 = vmatpush1.msra.mxu0 %v100
  %1362 = vmatprep.subr.mxu0 %v104
  %1363 = vmatpush1.msra.mxu0 %v103
  %1364 = vmatprep.subr.mxu0 %v107
  %1365 = vmatpush1.msra.mxu0 %v106
  %1366 = vmatprep.subr.mxu0 %v110
  %1367 = vmatpush1.msra.mxu0 %v109
  %1368 = vmatprep.subr.mxu0 %v113
  %1369 = vmatpush1.msra.mxu0 %v112
  %1370 = vmatprep.subr.mxu0 %v116
  %1371 = vmatpush1.msra.mxu0 %v115
  %1372 = vmatprep.subr.mxu0 %v119
  %1373 = vmatpush1.msra.mxu0 %v118
  %1374 = vmatprep.subr.mxu0 %v122
  %1375 = vmatpush1.msra.mxu0 %v121
  %1376 = vmatprep.subr.mxu0 %v125
  %1377 = vmatpush1.msra.mxu0 %v124
  %1378 = vmatprep.subr.mxu0 0.0
  %1379 = vmatpush1.msra.mxu0 0.0
  %1380 = vmatprep.subr.mxu0 0.0
  %1381 = vmatpush1.msra.mxu0 0.0
  %1382 = vmatprep.subr.mxu0 0.0
  %1383 = vmatpush1.msra.mxu0 0.0
  %1384 = vmatprep.subr.mxu0 0.0
  %1385 = vmatpush1.msra.mxu0 0.0
  %1386 = vmatprep.subr.mxu0 0.0
  %1387 = vmatpush1.msra.mxu0 0.0
  %1388 = vmatprep.subr.mxu0 0.0
  %1389 = vmatpush1.msra.mxu0 0.0
  %1390 = vmatprep.subr.mxu0 0.0
  %1391 = vmatpush1.msra.mxu0 0.0
  %1392 = vmatprep.subr.mxu0 0.0
  %1393 = vmatpush1.msra.mxu0 0.0
  %1394 = vmatprep.subr.mxu0 0.0
  %1395 = vmatpush1.msra.mxu0 0.0
  %1396 = vmatprep.subr.mxu0 0.0
  %1397 = vmatpush1.msra.mxu0 0.0
  %1398 = vmatprep.subr.mxu0 0.0
  %1399 = vmatpush1.msra.mxu0 0.0
  %1400 = vmatprep.subr.mxu0 0.0
  %1401 = vmatpush1.msra.mxu0 0.0
  %1402 = vmatprep.subr.mxu0 0.0
  %1403 = vmatpush1.msra.mxu0 0.0
  %1404 = vmatprep.subr.mxu0 0.0
  %1405 = vmatpush1.msra.mxu0 0.0
  %1406 = vmatprep.subr.mxu0 0.0
  %1407 = vmatpush1.msra.mxu0 0.0
  %1408 = vmatprep.subr.mxu0 0.0
  %1409 = vmatpush1.msra.mxu0 0.0
  %1410 = vmatprep.mubr.f32.mxu0 0.0
  %1411 = vmatmul.mubr.f32.gmra.mrb[0].mxu0 %v1344
  %v1412 = vpop.f32.mrb[0].mxu0
  %v1413 = vadd.f32 %v303, %v1412
  %v1414 = vpop.f32.mrb[0].mxu0
  %v1415 = vadd.f32 %v307, %v1414
  %1416 = vdwg.mxu0
  %1417 = vmatprep.subr.mxu0 0.0
  %1418 = vmatpush1.msra.mxu0 %v81
  %1419 = vmatprep.subr.mxu0 0.0
  %1420 = vmatpush1.msra.mxu0 %v84
  %1421 = vmatprep.subr.mxu0 0.0
  %1422 = vmatpush1.msra.mxu0 %v87
  %1423 = vmatprep.subr.mxu0 0.0
  %1424 = vmatpush1.msra.mxu0 %v90
  %1425 = vmatprep.subr.mxu0 0.0
  %1426 = vmatpush1.msra.mxu0 %v93
  %1427 = vmatprep.subr.mxu0 0.0
  %1428 = vmatpush1.msra.mxu0 %v96
  %1429 = vmatprep.subr.mxu0 0.0
  %1430 = vmatpush1.msra.mxu0 %v99
  %1431 = vmatprep.subr.mxu0 0.0
  %1432 = vmatpush1.msra.mxu0 %v102
  %1433 = vmatprep.subr.mxu0 0.0
  %1434 = vmatpush1.msra.mxu0 %v105
  %1435 = vmatprep.subr.mxu0 0.0
  %1436 = vmatpush1.msra.mxu0 %v108
  %1437 = vmatprep.subr.mxu0 0.0
  %1438 = vmatpush1.msra.mxu0 %v111
  %1439 = vmatprep.subr.mxu0 0.0
  %1440 = vmatpush1.msra.mxu0 %v114
  %1441 = vmatprep.subr.mxu0 0.0
  %1442 = vmatpush1.msra.mxu0 %v117
  %1443 = vmatprep.subr.mxu0 0.0
  %1444 = vmatpush1.msra.mxu0 %v120
  %1445 = vmatprep.subr.mxu0 0.0
  %1446 = vmatpush1.msra.mxu0 %v123
  %1447 = vmatprep.subr.mxu0 0.0
  %1448 = vmatpush1.msra.mxu0 %v126
  %1449 = vmatprep.subr.mxu0 0.0
  %1450 = vmatpush1.msra.mxu0 0.0
  %1451 = vmatprep.subr.mxu0 0.0
  %1452 = vmatpush1.msra.mxu0 0.0
  %1453 = vmatprep.subr.mxu0 0.0
  %1454 = vmatpush1.msra.mxu0 0.0
  %1455 = vmatprep.subr.mxu0 0.0
  %1456 = vmatpush1.msra.mxu0 0.0
  %1457 = vmatprep.subr.mxu0 0.0
  %1458 = vmatpush1.msra.mxu0 0.0
  %1459 = vmatprep.subr.mxu0 0.0
  %1460 = vmatpush1.msra.mxu0 0.0
  %1461 = vmatprep.subr.mxu0 0.0
  %1462 = vmatpush1.msra.mxu0 0.0
  %1463 = vmatprep.subr.mxu0 0.0
  %1464 = vmatpush1.msra.mxu0 0.0
  %1465 = vmatprep.subr.mxu0 0.0
  %1466 = vmatpush1.msra.mxu0 0.0
  %1467 = vmatprep.subr.mxu0 0.0
  %1468 = vmatpush1.msra.mxu0 0.0
  %1469 = vmatprep.subr.mxu0 0.0
  %1470 = vmatpush1.msra.mxu0 0.0
  %1471 = vmatprep.subr.mxu0 0.0
  %1472 = vmatpush1.msra.mxu0 0.0
  %1473 = vmatprep.subr.mxu0 0.0
  %1474 = vmatpush1.msra.mxu0 0.0
  %1475 = vmatprep.subr.mxu0 0.0
  %1476 = vmatpush1.msra.mxu0 0.0
  %1477 = vmatprep.subr.mxu0 0.0
  %1478 = vmatpush1.msra.mxu0 0.0
  %1479 = vmatprep.subr.mxu0 0.0
  %1480 = vmatpush1.msra.mxu0 0.0
  %1481 = vmatprep.mubr.f32.mxu0 0.0
  %1482 = vmatmul.mubr.f32.gmra.mrb[0].mxu0 %v1344
  %v1483 = vpop.f32.mrb[0].mxu0
  %v1484 = vadd.f32 %v311, %v1483
  %v1485 = vpop.f32.mrb[0].mxu0
  %1486 = vdwg.mxu0
  %v1488 = vrot.slane %v1413, 4
  %v1490 = vadd.f32 %v219, %v1488
  %v1491 = vxor.u32 %v1490, 2147483648
  %v1492 = vmul.f32 %v1491, 1.442695
  %v1493 = vpow.pop %v1492
  %v1494 = vadd.f32 %v1493, 1.0
  %v1495 = vrcp.pop %v1494
  %v1496 = vmul.f32 1.0, %v1495
  %v1498 = vrot.slane %v1415, 4
  %v1500 = vadd.f32 %v221, %v1498
  %v1501 = vxor.u32 %v1500, 2147483648
  %v1502 = vmul.f32 %v1501, 1.442695
  %v1503 = vpow.pop %v1502
  %v1504 = vadd.f32 %v1503, 1.0
  %v1505 = vrcp.pop %v1504
  %v1506 = vmul.f32 1.0, %v1505
  %v1508 = vrot.slane %v1484, 4
  %v1510 = vmul.f32 %v1496, %v1508
  %v1511 = vadd.f32 %v295, %v1510
  %v1512 = vtanh.pop %v1511
  %v1513 = vsub.f32 1.0, %v1506
  %v1514 = vmul.f32 %v1513, %v1512
  %v1515 = vrot.slane %v1342, 6
  %v1517 = vmul.f32 %v1506, %v1515
  %v1518 = vadd.f32 %v1514, %v1517
  %v1520 = vrot.slane %v1518, 4
  %1522 = vmatprep.subr.mxu0 %v80
  %1523 = vmatpush1.msra.mxu0 %v79
  %1524 = vmatprep.subr.mxu0 %v83
  %1525 = vmatpush1.msra.mxu0 %v82
  %1526 = vmatprep.subr.mxu0 %v86
  %1527 = vmatpush1.msra.mxu0 %v85
  %1528 = vmatprep.subr.mxu0 %v89
  %1529 = vmatpush1.msra.mxu0 %v88
  %1530 = vmatprep.subr.mxu0 %v92
  %1531 = vmatpush1.msra.mxu0 %v91
  %1532 = vmatprep.subr.mxu0 %v95
  %1533 = vmatpush1.msra.mxu0 %v94
  %1534 = vmatprep.subr.mxu0 %v98
  %1535 = vmatpush1.msra.mxu0 %v97
  %1536 = vmatprep.subr.mxu0 %v101
  %1537 = vmatpush1.msra.mxu0 %v100
  %1538 = vmatprep.subr.mxu0 %v104
  %1539 = vmatpush1.msra.mxu0 %v103
  %1540 = vmatprep.subr.mxu0 %v107
  %1541 = vmatpush1.msra.mxu0 %v106
  %1542 = vmatprep.subr.mxu0 %v110
  %1543 = vmatpush1.msra.mxu0 %v109
  %1544 = vmatprep.subr.mxu0 %v113
  %1545 = vmatpush1.msra.mxu0 %v112
  %1546 = vmatprep.subr.mxu0 %v116
  %1547 = vmatpush1.msra.mxu0 %v115
  %1548 = vmatprep.subr.mxu0 %v119
  %1549 = vmatpush1.msra.mxu0 %v118
  %1550 = vmatprep.subr.mxu0 %v122
  %1551 = vmatpush1.msra.mxu0 %v121
  %1552 = vmatprep.subr.mxu0 %v125
  %1553 = vmatpush1.msra.mxu0 %v124
  %1554 = vmatprep.subr.mxu0 0.0
  %1555 = vmatpush1.msra.mxu0 0.0
  %1556 = vmatprep.subr.mxu0 0.0
  %1557 = vmatpush1.msra.mxu0 0.0
  %1558 = vmatprep.subr.mxu0 0.0
  %1559 = vmatpush1.msra.mxu0 0.0
  %1560 = vmatprep.subr.mxu0 0.0
  %1561 = vmatpush1.msra.mxu0 0.0
  %1562 = vmatprep.subr.mxu0 0.0
  %1563 = vmatpush1.msra.mxu0 0.0
  %1564 = vmatprep.subr.mxu0 0.0
  %1565 = vmatpush1.msra.mxu0 0.0
  %1566 = vmatprep.subr.mxu0 0.0
  %1567 = vmatpush1.msra.mxu0 0.0
  %1568 = vmatprep.subr.mxu0 0.0
  %1569 = vmatpush1.msra.mxu0 0.0
  %1570 = vmatprep.subr.mxu0 0.0
  %1571 = vmatpush1.msra.mxu0 0.0
  %1572 = vmatprep.subr.mxu0 0.0
  %1573 = vmatpush1.msra.mxu0 0.0
  %1574 = vmatprep.subr.mxu0 0.0
  %1575 = vmatpush1.msra.mxu0 0.0
  %1576 = vmatprep.subr.mxu0 0.0
  %1577 = vmatpush1.msra.mxu0 0.0
  %1578 = vmatprep.subr.mxu0 0.0
  %1579 = vmatpush1.msra.mxu0 0.0
  %1580 = vmatprep.subr.mxu0 0.0
  %1581 = vmatpush1.msra.mxu0 0.0
  %1582 = vmatprep.subr.mxu0 0.0
  %1583 = vmatpush1.msra.mxu0 0.0
  %1584 = vmatprep.subr.mxu0 0.0
  %1585 = vmatpush1.msra.mxu0 0.0
  %1586 = vmatprep.mubr.f32.mxu0 0.0
  %1587 = vmatmul.mubr.f32.gmra.mrb[0].mxu0 %v1520
  %v1588 = vpop.f32.mrb[0].mxu0
  %v1589 = vadd.f32 %v303, %v1588
  %v1590 = vpop.f32.mrb[0].mxu0
  %v1591 = vadd.f32 %v307, %v1590
  %1592 = vdwg.mxu0
  %1593 = vmatprep.subr.mxu0 0.0
  %1594 = vmatpush1.msra.mxu0 %v81
  %1595 = vmatprep.subr.mxu0 0.0
  %1596 = vmatpush1.msra.mxu0 %v84
  %1597 = vmatprep.subr.mxu0 0.0
  %1598 = vmatpush1.msra.mxu0 %v87
  %1599 = vmatprep.subr.mxu0 0.0
  %1600 = vmatpush1.msra.mxu0 %v90
  %1601 = vmatprep.subr.mxu0 0.0
  %1602 = vmatpush1.msra.mxu0 %v93
  %1603 = vmatprep.subr.mxu0 0.0
  %1604 = vmatpush1.msra.mxu0 %v96
  %1605 = vmatprep.subr.mxu0 0.0
  %1606 = vmatpush1.msra.mxu0 %v99
  %1607 = vmatprep.subr.mxu0 0.0
  %1608 = vmatpush1.msra.mxu0 %v102
  %1609 = vmatprep.subr.mxu0 0.0
  %1610 = vmatpush1.msra.mxu0 %v105
  %1611 = vmatprep.subr.mxu0 0.0
  %1612 = vmatpush1.msra.mxu0 %v108
  %1613 = vmatprep.subr.mxu0 0.0
  %1614 = vmatpush1.msra.mxu0 %v111
  %1615 = vmatprep.subr.mxu0 0.0
  %1616 = vmatpush1.msra.mxu0 %v114
  %1617 = vmatprep.subr.mxu0 0.0
  %1618 = vmatpush1.msra.mxu0 %v117
  %1619 = vmatprep.subr.mxu0 0.0
  %1620 = vmatpush1.msra.mxu0 %v120
  %1621 = vmatprep.subr.mxu0 0.0
  %1622 = vmatpush1.msra.mxu0 %v123
  %1623 = vmatprep.subr.mxu0 0.0
  %1624 = vmatpush1.msra.mxu0 %v126
  %1625 = vmatprep.subr.mxu0 0.0
  %1626 = vmatpush1.msra.mxu0 0.0
  %1627 = vmatprep.subr.mxu0 0.0
  %1628 = vmatpush1.msra.mxu0 0.0
  %1629 = vmatprep.subr.mxu0 0.0
  %1630 = vmatpush1.msra.mxu0 0.0
  %1631 = vmatprep.subr.mxu0 0.0
  %1632 = vmatpush1.msra.mxu0 0.0
  %1633 = vmatprep.subr.mxu0 0.0
  %1634 = vmatpush1.msra.mxu0 0.0
  %1635 = vmatprep.subr.mxu0 0.0
  %1636 = vmatpush1.msra.mxu0 0.0
  %1637 = vmatprep.subr.mxu0 0.0
  %1638 = vmatpush1.msra.mxu0 0.0
  %1639 = vmatprep.subr.mxu0 0.0
  %1640 = vmatpush1.msra.mxu0 0.0
  %1641 = vmatprep.subr.mxu0 0.0
  %1642 = vmatpush1.msra.mxu0 0.0
  %1643 = vmatprep.subr.mxu0 0.0
  %1644 = vmatpush1.msra.mxu0 0.0
  %1645 = vmatprep.subr.mxu0 0.0
  %1646 = vmatpush1.msra.mxu0 0.0
  %1647 = vmatprep.subr.mxu0 0.0
  %1648 = vmatpush1.msra.mxu0 0.0
  %1649 = vmatprep.subr.mxu0 0.0
  %1650 = vmatpush1.msra.mxu0 0.0
  %1651 = vmatprep.subr.mxu0 0.0
  %1652 = vmatpush1.msra.mxu0 0.0
  %1653 = vmatprep.subr.mxu0 0.0
  %1654 = vmatpush1.msra.mxu0 0.0
  %1655 = vmatprep.subr.mxu0 0.0
  %1656 = vmatpush1.msra.mxu0 0.0
  %1657 = vmatprep.mubr.f32.mxu0 0.0
  %1658 = vmatmul.mubr.f32.gmra.mrb[0].mxu0 %v1520
  %v1659 = vpop.f32.mrb[0].mxu0
  %v1660 = vadd.f32 %v311, %v1659
  %v1661 = vpop.f32.mrb[0].mxu0
  %1662 = vdwg.mxu0
  %v1664 = vrot.slane %v1589, 2
  %v1666 = vadd.f32 %v219, %v1664
  %v1667 = vxor.u32 %v1666, 2147483648
  %v1668 = vmul.f32 %v1667, 1.442695
  %v1669 = vpow.pop %v1668
  %v1670 = vadd.f32 %v1669, 1.0
  %v1671 = vrcp.pop %v1670
  %v1672 = vmul.f32 1.0, %v1671
  %v1674 = vrot.slane %v1591, 2
  %v1676 = vadd.f32 %v221, %v1674
  %v1677 = vxor.u32 %v1676, 2147483648
  %v1678 = vmul.f32 %v1677, 1.442695
  %v1679 = vpow.pop %v1678
  %v1680 = vadd.f32 %v1679, 1.0
  %v1681 = vrcp.pop %v1680
  %v1682 = vmul.f32 1.0, %v1681
  %v1684 = vrot.slane %v1660, 2
  %v1686 = vmul.f32 %v1672, %v1684
  %v1687 = vadd.f32 %v295, %v1686
  %v1688 = vtanh.pop %v1687
  %v1689 = vsub.f32 1.0, %v1682
  %v1690 = vmul.f32 %v1689, %v1688
  %v1691 = vrot.slane %v1518, 6
  %v1693 = vmul.f32 %v1682, %v1691
  %v1694 = vadd.f32 %v1690, %v1693
  %1695 = vst [vmem:[%s9 - $0x6] sm:$0xc0] %v1694
  %vm1696 = vcmask 1041408
  %v1697 = vsel %vm1696, %v477, %v651
  %vm1698 = vcmask 1043456
  %v1699 = vsel %vm1698, %v1697, %v827
  %vm1700 = vcmask 1045504
  %v1701 = vsel %vm1700, %v1699, %v1003
  %v1702 = vsel %vm1696, %v1168, %v1342
  %v1703 = vsel %vm1698, %v1702, %v1518
  %v1704 = vsel %vm1700, %v1703, %v1694
  %v1705 = vld [vmem:[%s6] sm:$0xff]
  %v1706 = vld [vmem:[%s6 + $0x8] sm:$0xff]
  %v1707 = vld [vmem:[%s6 + $0x10] sm:$0xff]
  %v1708 = vld [vmem:[%s6 + $0x18] sm:$0xff]
  %v1709 = vld [vmem:[%s6 + $0x20] sm:$0xff]
  %v1710 = vld [vmem:[%s6 + $0x28] sm:$0xff]
  %v1711 = vld [vmem:[%s6 + $0x30] sm:$0xff]
  %v1712 = vld [vmem:[%s6 + $0x38] sm:$0xff]
  %v1713 = vld [vmem:[%s6 + $0x40] sm:$0xff]
  %v1714 = vld [vmem:[%s6 + $0x48] sm:$0xff]
  %v1715 = vld [vmem:[%s6 + $0x50] sm:$0xff]
  %v1716 = vld [vmem:[%s6 + $0x58] sm:$0xff]
  %v1717 = vld [vmem:[%s6 + $0x60] sm:$0xff]
  %v1718 = vld [vmem:[%s6 + $0x68] sm:$0xff]
  %v1719 = vld [vmem:[%s6 + $0x70] sm:$0xff]
  %v1720 = vld [vmem:[%s6 + $0x78] sm:$0xff]
  %v1721 = vld [vmem:[%s7] sm:$0x1]
  %v1723 = vlaneseq
  %v1724 = vshrl.u32 %v1723, 7
  %v1725 = vsub.s32 0, %v1724
  %v1726 = vrot.slane %v1721, %v1725
  %1728 = vmatprep.subr.mxu0 0.0
  %1729 = vmatpush1.msra.mxu0 %v1705
  %1730 = vmatprep.subr.mxu0 0.0
  %1731 = vmatpush1.msra.mxu0 %v1706
  %1732 = vmatprep.subr.mxu0 0.0
  %1733 = vmatpush1.msra.mxu0 %v1707
  %1734 = vmatprep.subr.mxu0 0.0
  %1735 = vmatpush1.msra.mxu0 %v1708
  %1736 = vmatprep.subr.mxu0 0.0
  %1737 = vmatpush1.msra.mxu0 %v1709
  %1738 = vmatprep.subr.mxu0 0.0
  %1739 = vmatpush1.msra.mxu0 %v1710
  %1740 = vmatprep.subr.mxu0 0.0
  %1741 = vmatpush1.msra.mxu0 %v1711
  %1742 = vmatprep.subr.mxu0 0.0
  %1743 = vmatpush1.msra.mxu0 %v1712
  %1744 = vmatprep.subr.mxu0 0.0
  %1745 = vmatpush1.msra.mxu0 %v1713
  %1746 = vmatprep.subr.mxu0 0.0
  %1747 = vmatpush1.msra.mxu0 %v1714
  %1748 = vmatprep.subr.mxu0 0.0
  %1749 = vmatpush1.msra.mxu0 %v1715
  %1750 = vmatprep.subr.mxu0 0.0
  %1751 = vmatpush1.msra.mxu0 %v1716
  %1752 = vmatprep.subr.mxu0 0.0
  %1753 = vmatpush1.msra.mxu0 %v1717
  %1754 = vmatprep.subr.mxu0 0.0
  %1755 = vmatpush1.msra.mxu0 %v1718
  %1756 = vmatprep.subr.mxu0 0.0
  %1757 = vmatpush1.msra.mxu0 %v1719
  %1758 = vmatprep.subr.mxu0 0.0
  %1759 = vmatpush1.msra.mxu0 %v1720
  %1760 = vmatprep.subr.mxu0 0.0
  %1761 = vmatpush1.msra.mxu0 0.0
  %1762 = vmatprep.subr.mxu0 0.0
  %1763 = vmatpush1.msra.mxu0 0.0
  %1764 = vmatprep.subr.mxu0 0.0
  %1765 = vmatpush1.msra.mxu0 0.0
  %1766 = vmatprep.subr.mxu0 0.0
  %1767 = vmatpush1.msra.mxu0 0.0
  %1768 = vmatprep.subr.mxu0 0.0
  %1769 = vmatpush1.msra.mxu0 0.0
  %1770 = vmatprep.subr.mxu0 0.0
  %1771 = vmatpush1.msra.mxu0 0.0
  %1772 = vmatprep.subr.mxu0 0.0
  %1773 = vmatpush1.msra.mxu0 0.0
  %1774 = vmatprep.subr.mxu0 0.0
  %1775 = vmatpush1.msra.mxu0 0.0
  %1776 = vmatprep.subr.mxu0 0.0
  %1777 = vmatpush1.msra.mxu0 0.0
  %1778 = vmatprep.subr.mxu0 0.0
  %1779 = vmatpush1.msra.mxu0 0.0
  %1780 = vmatprep.subr.mxu0 0.0
  %1781 = vmatpush1.msra.mxu0 0.0
  %1782 = vmatprep.subr.mxu0 0.0
  %1783 = vmatpush1.msra.mxu0 0.0
  %1784 = vmatprep.subr.mxu0 0.0
  %1785 = vmatpush1.msra.mxu0 0.0
  %1786 = vmatprep.subr.mxu0 0.0
  %1787 = vmatpush1.msra.mxu0 0.0
  %1788 = vmatprep.subr.mxu0 0.0
  %1789 = vmatpush1.msra.mxu0 0.0
  %1790 = vmatprep.subr.mxu0 0.0
  %1791 = vmatpush1.msra.mxu0 0.0
  %1792 = vmatprep.mubr.f32.mxu0 0.0
  %1793 = vmatmul.mubr.f32.gmra.mrb[0].mxu0 %v1701
  %v1794 = vpop.f32.mrb[0].mxu0
  %v1795 = vadd.f32 %v1726, %v1794
  %v1796 = vpop.f32.mrb[0].mxu0
  %1797 = vmatprep.mubr.f32.mxu0 0.0
  %1798 = vmatmul.mubr.f32.gmra.mrb[0].mxu0 %v1704
  %v1799 = vpop.f32.mrb[0].mxu0
  %v1800 = vadd.f32 %v1726, %v1799
  %v1801 = vpop.f32.mrb[0].mxu0
  %1802 = vdwg.mxu0
  %1803 = vmax.xlane.f32.xlu0 %v1795
  %v1804 = vpop.xlane.xlu0 %1803
  %1805 = vmax.xlane.f32.xlu0 %v1800
  %v1806 = vpop.xlane.xlu0 %1805
  %v1807 = vsub.f32 %v1795, %v1804
  %v1808 = vsub.f32 %v1800, %v1806
  %v1809 = vmul.f32 %v1807, 1.442695
  %v1810 = vpow.pop %v1809
  %v1811 = vmul.f32 %v1808, 1.442695
  %v1812 = vpow.pop %v1811
  %1813 = vadd.xlane.f32.xlu0 %v1810
  %v1814 = vpop.xlane.xlu0 %1813
  %1815 = vadd.xlane.f32.xlu0 %v1812
  %v1816 = vpop.xlane.xlu0 %1815
  %v1817 = vlog2.pop %v1814
  %v1818 = vmul.f32 %v1817, 0.6931472
  %v1819 = vlog2.pop %v1816
  %v1820 = vmul.f32 %v1819, 0.6931472
  %v1821 = vadd.f32 %v1804, %v1818
  %v1822 = vadd.f32 %v1806, %v1820
  %v1823 = vsub.f32 %v1795, %v1821
  %v1824 = vsub.f32 %v1800, %v1822
  %1825 = vst [vmem:[%s8] sm:$0xff] %v1823
  %1826 = vst [vmem:[%s8 + $0x8] sm:$0xff] %v1824
  // Predicated region
  $region34: #{decoder_forward.1} parent=0 // pred_check
    _
  $region35: #{decoder_forward.1} parent=0 // pred_check_branch
    %1828 = sbr.rel (0) target = $region37
  $region36: #{decoder_forward.1} parent=0 // pred_region
    _
  $region37: #{decoder_forward.1} parent=0 // pred_fallthru
    _
  // Predicated region
  $region38: #{decoder_forward.1} parent=0 // pred_check
    _
  $region39: #{decoder_forward.1} parent=0 // pred_check_branch
    %1830 = sbr.rel (0) target = $region41
  $region40: #{decoder_forward.1} parent=0 // pred_region
    _
  $region41: #{decoder_forward.1} parent=0 // pred_fallthru
    _
  // Predicated region
  $region42: #{decoder_forward.1} parent=0 // pred_check
    _
  $region43: #{decoder_forward.1} parent=0 // pred_check_branch
    %1832 = sbr.rel (0) target = $region45
  $region44: #{decoder_forward.1} parent=0 // pred_region
    _
  $region45: #{decoder_forward.1} parent=0 // pred_fallthru
    _
  // Predicated region
  $region46: #{decoder_forward.1} parent=0 // pred_check
    _
  $region47: #{decoder_forward.1} parent=0 // pred_check_branch
    %1834 = sbr.rel (0) target = $region49
  $region48: #{decoder_forward.1} parent=0 // pred_region
    _
  $region49: #{decoder_forward.1} parent=0 // pred_fallthru
    _

</llo_original>
